<compile_context>
chip_gen: v7x
topology: tpu7x:2x2x1
jax: 0.10.0
libtpu: 0.0.40
codegen_flags: <defaults>
</compile_context>

<pallas_src>
import jax
import jax.numpy as jnp
from jax import lax
from jax.experimental import pallas as pl
from jax.experimental.pallas import tpu as pltpu

D_HIDDEN = 128
INPUT_SIZE = 1
OUTPUT_SIZE = 10
NUM_LAYERS = 1

_LANE = 128
_SUBLANE = 8
_NEG_BIG = -1e30  # fills padded logit columns; exp() underflows to exactly 0


def _sigmoid(v):
    # single-EUP sigmoid: sigma(x) = 0.5 * (tanh(x/2) + 1)
    return 0.5 * (jnp.tanh(0.5 * v) + 1.0)


# --------------------------------------------------------------------------- #
# Pallas kernel: full GRU recurrence + final Linear + log_softmax
# --------------------------------------------------------------------------- #
def _gru_kernel(x_ref, h0_ref, wih_ref, whh_ref, bfold_ref, bhn_ref,
                wlin_ref, blin_ref, logp_ref, hn_ref):
    T, B, I = x_ref.shape
    H = h0_ref.shape[-1]

    wih = wih_ref[...]      # (I, 3H)   gate order: [r, z, n] (PyTorch)
    whh = whh_ref[...]      # (H, 3H)
    bfold = bfold_ref[...]  # (1, 3H)   b_ih with b_hh folded into the r/z slices
    b_hn = bhn_ref[...]     # (1, H)    b_hh n-slice (must stay inside r * (...))

    # Hoisted input projection: per-step input contribution computed once, off
    # the serial critical path.  (T, B, I) x (I, 3H) -> (T, B, 3H)
    x_all = x_ref[...]
    if I == 1:
        gi_all = x_all * wih + bfold          # broadcast mul (K=1 contraction)
    else:
        gi_all = (jnp.dot(x_all.reshape(T * B, I), wih,
                          preferred_element_type=jnp.float32)
                  .reshape(T, B, 3 * H) + bfold)

    h = h0_ref[...]
    # T is static and small: full unroll (static Python loop) so MXU push/pop,
    # EUP tanh and VPU gate math from adjacent steps can be interleaved.
    for t in range(T):
        gi = gi_all[t]                                              # (B, 3H)
        gh = jnp.dot(h, whh, preferred_element_type=jnp.float32)    # (B, 3H)
        r = _sigmoid(gi[:, 0:H] + gh[:, 0:H])
        z = _sigmoid(gi[:, H:2 * H] + gh[:, H:2 * H])
        n = jnp.tanh(gi[:, 2 * H:] + r * (gh[:, 2 * H:] + b_hn))
        h = (1.0 - z) * n + z * h

    hn_ref[...] = h

    # Linear(H -> O) + log_softmax on a lane-dense (B, 128)-padded block.
    # Padded columns have bias -1e30, so they contribute 0 to the softmax sum
    # and the first O columns are the exact log_softmax over the real logits.
    logits = jnp.dot(h, wlin_ref[...],
                     preferred_element_type=jnp.float32) + blin_ref[...]
    m = jnp.max(logits, axis=-1, keepdims=True)
    shifted = logits - m
    lse = jnp.log(jnp.sum(jnp.exp(shifted), axis=-1, keepdims=True))
    logp_ref[...] = shifted - lse


# --------------------------------------------------------------------------- #
# Wrapper (plain-JAX glue: padding, transposes, parameter folding)
# --------------------------------------------------------------------------- #
def gru_forward(x, hidden, params):
    """x: (B, T, I) float32, hidden: (num_layers, B, H) float32."""
    B, T, I = x.shape
    H = params["w_hh"].shape[1]
    O = params["w_lin"].shape[0]
    assert hidden.shape == (NUM_LAYERS, B, H)

    Bp = max(_SUBLANE, ((B + _SUBLANE - 1) // _SUBLANE) * _SUBLANE)
    Op = max(_LANE, ((O + _LANE - 1) // _LANE) * _LANE)

    x_tm = jnp.transpose(x, (1, 0, 2)).astype(jnp.float32)       # (T, B, I)
    x_tm = jnp.pad(x_tm, ((0, 0), (0, Bp - B), (0, 0)))          # (T, Bp, I)
    h0 = jnp.pad(hidden[-1].astype(jnp.float32), ((0, Bp - B), (0, 0)))

    wihT = params["w_ih"].T.astype(jnp.float32)                  # (I, 3H)
    whhT = params["w_hh"].T.astype(jnp.float32)                  # (H, 3H)
    b_ih = params["b_ih"].astype(jnp.float32)
    b_hh = params["b_hh"].astype(jnp.float32)
    # Fold: r/z slices of b_hh are outside the r-gated term, so add them once.
    b_fold = b_ih.at[:2 * H].add(b_hh[:2 * H]).reshape(1, 3 * H)
    b_hn = b_hh[2 * H:].reshape(1, H)

    wlin_pad = (jnp.zeros((H, Op), jnp.float32)
                .at[:, :O].set(params["w_lin"].T.astype(jnp.float32)))
    blin_pad = (jnp.full((1, Op), _NEG_BIG, jnp.float32)
                .at[0, :O].set(params["b_lin"].astype(jnp.float32)))

    vmem = pl.BlockSpec(memory_space=pltpu.MemorySpace.VMEM)
    logp_pad, h_n = pl.pallas_call(
        _gru_kernel,
        out_shape=(jax.ShapeDtypeStruct((Bp, Op), jnp.float32),
                   jax.ShapeDtypeStruct((Bp, H), jnp.float32)),
        in_specs=[vmem] * 8,
        out_specs=(vmem, vmem),
    )(x_tm, h0, wihT, whhT, b_fold, b_hn, wlin_pad, blin_pad)

    return logp_pad[:B, :O], h_n[:B].reshape(NUM_LAYERS, B, H)


# --------------------------------------------------------------------------- #
# Deterministic parameter init (mirrors the PyTorch module's __init__)
# --------------------------------------------------------------------------- #
def init_params(key, input_size=INPUT_SIZE, d_hidden=D_HIDDEN,
                output_size=OUTPUT_SIZE, initial_update_gate_bias=0.5):
    H = d_hidden
    k = 1.0 / float(jnp.sqrt(jnp.float32(H)))
    ks = jax.random.split(key, 6)
    w_ih = jax.random.uniform(ks[0], (3 * H, input_size), jnp.float32, -k, k)
    w_hh = jax.random.uniform(ks[1], (3 * H, H), jnp.float32, -k, k)
    b_ih = jax.random.uniform(ks[2], (3 * H,), jnp.float32, -k, k)
    b_hh = jax.random.uniform(ks[3], (3 * H,), jnp.float32, -k, k)
    # init_weights(): update-gate (z) bias slice set to initial_update_gate_bias
    b_ih = b_ih.at[H:2 * H].set(initial_update_gate_bias)
    b_hh = b_hh.at[H:2 * H].set(initial_update_gate_bias)
    # linear.weight ~ N(0, 0.01); bias keeps default uniform init
    w_lin = 0.01 * jax.random.normal(ks[4], (output_size, H), jnp.float32)
    b_lin = jax.random.uniform(ks[5], (output_size,), jnp.float32, -k, k)
    return dict(w_ih=w_ih, w_hh=w_hh, b_ih=b_ih, b_hh=b_hh, w_lin=w_lin, b_lin=b_lin)


# --------------------------------------------------------------------------- #
# Pure-JAX reference for correctness check
# --------------------------------------------------------------------------- #
def gru_reference(x, hidden, params):
    B, T, I = x.shape
    H = params["w_hh"].shape[1]
    h = hidden[-1]
    wihT, whhT = params["w_ih"].T, params["w_hh"].T
    bih, bhh = params["b_ih"], params["b_hh"]
    for t in range(T):
        gi = x[:, t, :] @ wihT + bih
        gh = h @ whhT + bhh
        r = jax.nn.sigmoid(gi[:, :H] + gh[:, :H])
        z = jax.nn.sigmoid(gi[:, H:2 * H] + gh[:, H:2 * H])
        n = jnp.tanh(gi[:, 2 * H:] + r * gh[:, 2 * H:])
        h = (1.0 - z) * n + z * h
    logits = h @ params["w_lin"].T + params["b_lin"]
    return jax.nn.log_softmax(logits, axis=1), h.reshape(NUM_LAYERS, B, H)


if __name__ == "__main__":
    key = jax.random.PRNGKey(0)
    pkey, xkey = jax.random.split(key)

    params = init_params(pkey)

    B, T = 2, 8
    x = jax.random.normal(xkey, (B, T, INPUT_SIZE), jnp.float32)
    hidden0 = jnp.zeros((NUM_LAYERS, B, D_HIDDEN), jnp.float32)  # generate_initial_hidden

    logp, hidden_n = gru_forward(x, hidden0, params)
    jax.block_until_ready((logp, hidden_n))

    logp_ref, hidden_ref = gru_reference(x, hidden0, params)
    assert logp.shape == (B, OUTPUT_SIZE) and hidden_n.shape == (NUM_LAYERS, B, D_HIDDEN)
    assert jnp.allclose(logp, logp_ref, atol=1e-3, rtol=1e-3)
    assert jnp.allclose(hidden_n, hidden_ref, atol=1e-3, rtol=1e-3)

    print("KERNEL_OK")
</pallas_src>

<mosaic_0001>
module attributes {stable_mosaic.version = 11 : i64} {
  func.func @_gru_kernel(%arg0: memref<8x8x1xf32, #tpu.memory_space<vmem>>, %arg1: memref<8x128xf32, #tpu.memory_space<vmem>>, %arg2: memref<1x384xf32, #tpu.memory_space<vmem>>, %arg3: memref<128x384xf32, #tpu.memory_space<vmem>>, %arg4: memref<1x384xf32, #tpu.memory_space<vmem>>, %arg5: memref<1x128xf32, #tpu.memory_space<vmem>>, %arg6: memref<128x128xf32, #tpu.memory_space<vmem>>, %arg7: memref<1x128xf32, #tpu.memory_space<vmem>>, %arg8: memref<8x128xf32, #tpu.memory_space<vmem>>, %arg9: memref<8x128xf32, #tpu.memory_space<vmem>>) attributes {dimension_semantics = [], scalar_prefetch = 0 : i64, scratch_operands = 0 : i64, tpu.core_type = #tpu.core_type<tc>} {
    %c0 = arith.constant 0 : index
    %c0_0 = arith.constant 0 : index
    %0 = vector.load %arg2[%c0, %c0_0] : memref<1x384xf32, #tpu.memory_space<vmem>>, vector<1x384xf32>
    %c0_1 = arith.constant 0 : index
    %c0_2 = arith.constant 0 : index
    %1 = vector.load %arg3[%c0_1, %c0_2] : memref<128x384xf32, #tpu.memory_space<vmem>>, vector<128x384xf32>
    %c0_3 = arith.constant 0 : index
    %c0_4 = arith.constant 0 : index
    %2 = vector.load %arg4[%c0_3, %c0_4] : memref<1x384xf32, #tpu.memory_space<vmem>>, vector<1x384xf32>
    %c0_5 = arith.constant 0 : index
    %c0_6 = arith.constant 0 : index
    %3 = vector.load %arg5[%c0_5, %c0_6] : memref<1x128xf32, #tpu.memory_space<vmem>>, vector<1x128xf32>
    %c0_7 = arith.constant 0 : index
    %c0_8 = arith.constant 0 : index
    %c0_9 = arith.constant 0 : index
    %4 = vector.load %arg0[%c0_7, %c0_8, %c0_9] : memref<8x8x1xf32, #tpu.memory_space<vmem>>, vector<8x8x1xf32>
    %5 = vector.shape_cast %0 : vector<1x384xf32> to vector<1x1x384xf32>
    %6 = vector.broadcast %4 : vector<8x8x1xf32> to vector<8x8x384xf32>
    %7 = vector.broadcast %5 : vector<1x1x384xf32> to vector<8x8x384xf32>
    %8 = arith.mulf %6, %7 : vector<8x8x384xf32>
    %9 = vector.shape_cast %2 : vector<1x384xf32> to vector<1x1x384xf32>
    %10 = vector.broadcast %9 : vector<1x1x384xf32> to vector<8x8x384xf32>
    %11 = arith.addf %8, %10 : vector<8x8x384xf32>
    %c0_10 = arith.constant 0 : index
    %c0_11 = arith.constant 0 : index
    %12 = vector.load %arg1[%c0_10, %c0_11] : memref<8x128xf32, #tpu.memory_space<vmem>>, vector<8x128xf32>
    %13 = vector.extract_strided_slice %11 {offsets = [0, 0, 0], sizes = [1, 8, 384], strides = [1, 1, 1]} : vector<8x8x384xf32> to vector<1x8x384xf32>
    %14 = vector.shape_cast %13 : vector<1x8x384xf32> to vector<8x384xf32>
    %cst = arith.constant dense<0.000000e+00> : vector<8x384xf32>
    %15 = tpu.matmul %12, %1, %cst {dimension_numbers = #tpu.dot_dimension_numbers<[1], [0], [0], [1], [0, 0, 1, 1], [], []>} : vector<8x128xf32>, vector<128x384xf32>, vector<8x384xf32> -> vector<8x384xf32>
    %16 = vector.extract_strided_slice %14 {offsets = [0, 0], sizes = [8, 128], strides = [1, 1]} : vector<8x384xf32> to vector<8x128xf32>
    %17 = vector.extract_strided_slice %15 {offsets = [0, 0], sizes = [8, 128], strides = [1, 1]} : vector<8x384xf32> to vector<8x128xf32>
    %18 = arith.addf %16, %17 : vector<8x128xf32>
    %cst_12 = arith.constant 5.000000e-01 : f32
    %19 = vector.broadcast %cst_12 : f32 to vector<8x128xf32>
    %20 = arith.mulf %19, %18 : vector<8x128xf32>
    %21 = math.tanh %20 : vector<8x128xf32>
    %cst_13 = arith.constant 1.000000e+00 : f32
    %22 = vector.broadcast %cst_13 : f32 to vector<8x128xf32>
    %23 = arith.addf %21, %22 : vector<8x128xf32>
    %cst_14 = arith.constant 5.000000e-01 : f32
    %24 = vector.broadcast %cst_14 : f32 to vector<8x128xf32>
    %25 = arith.mulf %24, %23 : vector<8x128xf32>
    %26 = vector.extract_strided_slice %14 {offsets = [0, 128], sizes = [8, 128], strides = [1, 1]} : vector<8x384xf32> to vector<8x128xf32>
    %27 = vector.extract_strided_slice %15 {offsets = [0, 128], sizes = [8, 128], strides = [1, 1]} : vector<8x384xf32> to vector<8x128xf32>
    %28 = arith.addf %26, %27 : vector<8x128xf32>
    %cst_15 = arith.constant 5.000000e-01 : f32
    %29 = vector.broadcast %cst_15 : f32 to vector<8x128xf32>
    %30 = arith.mulf %29, %28 : vector<8x128xf32>
    %31 = math.tanh %30 : vector<8x128xf32>
    %cst_16 = arith.constant 1.000000e+00 : f32
    %32 = vector.broadcast %cst_16 : f32 to vector<8x128xf32>
    %33 = arith.addf %31, %32 : vector<8x128xf32>
    %cst_17 = arith.constant 5.000000e-01 : f32
    %34 = vector.broadcast %cst_17 : f32 to vector<8x128xf32>
    %35 = arith.mulf %34, %33 : vector<8x128xf32>
    %36 = vector.extract_strided_slice %14 {offsets = [0, 256], sizes = [8, 128], strides = [1, 1]} : vector<8x384xf32> to vector<8x128xf32>
    %37 = vector.extract_strided_slice %15 {offsets = [0, 256], sizes = [8, 128], strides = [1, 1]} : vector<8x384xf32> to vector<8x128xf32>
    %38 = vector.broadcast %3 : vector<1x128xf32> to vector<8x128xf32>
    %39 = arith.addf %37, %38 : vector<8x128xf32>
    %40 = arith.mulf %25, %39 : vector<8x128xf32>
    %41 = arith.addf %36, %40 : vector<8x128xf32>
    %42 = math.tanh %41 : vector<8x128xf32>
    %cst_18 = arith.constant 1.000000e+00 : f32
    %43 = vector.broadcast %cst_18 : f32 to vector<8x128xf32>
    %44 = arith.subf %43, %35 : vector<8x128xf32>
    %45 = arith.mulf %44, %42 : vector<8x128xf32>
    %46 = arith.mulf %35, %12 : vector<8x128xf32>
    %47 = arith.addf %45, %46 : vector<8x128xf32>
    %48 = vector.extract_strided_slice %11 {offsets = [1, 0, 0], sizes = [1, 8, 384], strides = [1, 1, 1]} : vector<8x8x384xf32> to vector<1x8x384xf32>
    %49 = vector.shape_cast %48 : vector<1x8x384xf32> to vector<8x384xf32>
    %cst_19 = arith.constant dense<0.000000e+00> : vector<8x384xf32>
    %50 = tpu.matmul %47, %1, %cst_19 {dimension_numbers = #tpu.dot_dimension_numbers<[1], [0], [0], [1], [0, 0, 1, 1], [], []>} : vector<8x128xf32>, vector<128x384xf32>, vector<8x384xf32> -> vector<8x384xf32>
    %51 = vector.extract_strided_slice %49 {offsets = [0, 0], sizes = [8, 128], strides = [1, 1]} : vector<8x384xf32> to vector<8x128xf32>
    %52 = vector.extract_strided_slice %50 {offsets = [0, 0], sizes = [8, 128], strides = [1, 1]} : vector<8x384xf32> to vector<8x128xf32>
    %53 = arith.addf %51, %52 : vector<8x128xf32>
    %cst_20 = arith.constant 5.000000e-01 : f32
    %54 = vector.broadcast %cst_20 : f32 to vector<8x128xf32>
    %55 = arith.mulf %54, %53 : vector<8x128xf32>
    %56 = math.tanh %55 : vector<8x128xf32>
    %cst_21 = arith.constant 1.000000e+00 : f32
    %57 = vector.broadcast %cst_21 : f32 to vector<8x128xf32>
    %58 = arith.addf %56, %57 : vector<8x128xf32>
    %cst_22 = arith.constant 5.000000e-01 : f32
    %59 = vector.broadcast %cst_22 : f32 to vector<8x128xf32>
    %60 = arith.mulf %59, %58 : vector<8x128xf32>
    %61 = vector.extract_strided_slice %49 {offsets = [0, 128], sizes = [8, 128], strides = [1, 1]} : vector<8x384xf32> to vector<8x128xf32>
    %62 = vector.extract_strided_slice %50 {offsets = [0, 128], sizes = [8, 128], strides = [1, 1]} : vector<8x384xf32> to vector<8x128xf32>
    %63 = arith.addf %61, %62 : vector<8x128xf32>
    %cst_23 = arith.constant 5.000000e-01 : f32
    %64 = vector.broadcast %cst_23 : f32 to vector<8x128xf32>
    %65 = arith.mulf %64, %63 : vector<8x128xf32>
    %66 = math.tanh %65 : vector<8x128xf32>
    %cst_24 = arith.constant 1.000000e+00 : f32
    %67 = vector.broadcast %cst_24 : f32 to vector<8x128xf32>
    %68 = arith.addf %66, %67 : vector<8x128xf32>
    %cst_25 = arith.constant 5.000000e-01 : f32
    %69 = vector.broadcast %cst_25 : f32 to vector<8x128xf32>
    %70 = arith.mulf %69, %68 : vector<8x128xf32>
    %71 = vector.extract_strided_slice %49 {offsets = [0, 256], sizes = [8, 128], strides = [1, 1]} : vector<8x384xf32> to vector<8x128xf32>
    %72 = vector.extract_strided_slice %50 {offsets = [0, 256], sizes = [8, 128], strides = [1, 1]} : vector<8x384xf32> to vector<8x128xf32>
    %73 = vector.broadcast %3 : vector<1x128xf32> to vector<8x128xf32>
    %74 = arith.addf %72, %73 : vector<8x128xf32>
    %75 = arith.mulf %60, %74 : vector<8x128xf32>
    %76 = arith.addf %71, %75 : vector<8x128xf32>
    %77 = math.tanh %76 : vector<8x128xf32>
    %cst_26 = arith.constant 1.000000e+00 : f32
    %78 = vector.broadcast %cst_26 : f32 to vector<8x128xf32>
    %79 = arith.subf %78, %70 : vector<8x128xf32>
    %80 = arith.mulf %79, %77 : vector<8x128xf32>
    %81 = arith.mulf %70, %47 : vector<8x128xf32>
    %82 = arith.addf %80, %81 : vector<8x128xf32>
    %83 = vector.extract_strided_slice %11 {offsets = [2, 0, 0], sizes = [1, 8, 384], strides = [1, 1, 1]} : vector<8x8x384xf32> to vector<1x8x384xf32>
    %84 = vector.shape_cast %83 : vector<1x8x384xf32> to vector<8x384xf32>
    %cst_27 = arith.constant dense<0.000000e+00> : vector<8x384xf32>
    %85 = tpu.matmul %82, %1, %cst_27 {dimension_numbers = #tpu.dot_dimension_numbers<[1], [0], [0], [1], [0, 0, 1, 1], [], []>} : vector<8x128xf32>, vector<128x384xf32>, vector<8x384xf32> -> vector<8x384xf32>
    %86 = vector.extract_strided_slice %84 {offsets = [0, 0], sizes = [8, 128], strides = [1, 1]} : vector<8x384xf32> to vector<8x128xf32>
    %87 = vector.extract_strided_slice %85 {offsets = [0, 0], sizes = [8, 128], strides = [1, 1]} : vector<8x384xf32> to vector<8x128xf32>
    %88 = arith.addf %86, %87 : vector<8x128xf32>
    %cst_28 = arith.constant 5.000000e-01 : f32
    %89 = vector.broadcast %cst_28 : f32 to vector<8x128xf32>
    %90 = arith.mulf %89, %88 : vector<8x128xf32>
    %91 = math.tanh %90 : vector<8x128xf32>
    %cst_29 = arith.constant 1.000000e+00 : f32
    %92 = vector.broadcast %cst_29 : f32 to vector<8x128xf32>
    %93 = arith.addf %91, %92 : vector<8x128xf32>
    %cst_30 = arith.constant 5.000000e-01 : f32
    %94 = vector.broadcast %cst_30 : f32 to vector<8x128xf32>
    %95 = arith.mulf %94, %93 : vector<8x128xf32>
    %96 = vector.extract_strided_slice %84 {offsets = [0, 128], sizes = [8, 128], strides = [1, 1]} : vector<8x384xf32> to vector<8x128xf32>
    %97 = vector.extract_strided_slice %85 {offsets = [0, 128], sizes = [8, 128], strides = [1, 1]} : vector<8x384xf32> to vector<8x128xf32>
    %98 = arith.addf %96, %97 : vector<8x128xf32>
    %cst_31 = arith.constant 5.000000e-01 : f32
    %99 = vector.broadcast %cst_31 : f32 to vector<8x128xf32>
    %100 = arith.mulf %99, %98 : vector<8x128xf32>
    %101 = math.tanh %100 : vector<8x128xf32>
    %cst_32 = arith.constant 1.000000e+00 : f32
    %102 = vector.broadcast %cst_32 : f32 to vector<8x128xf32>
    %103 = arith.addf %101, %102 : vector<8x128xf32>
    %cst_33 = arith.constant 5.000000e-01 : f32
    %104 = vector.broadcast %cst_33 : f32 to vector<8x128xf32>
    %105 = arith.mulf %104, %103 : vector<8x128xf32>
    %106 = vector.extract_strided_slice %84 {offsets = [0, 256], sizes = [8, 128], strides = [1, 1]} : vector<8x384xf32> to vector<8x128xf32>
    %107 = vector.extract_strided_slice %85 {offsets = [0, 256], sizes = [8, 128], strides = [1, 1]} : vector<8x384xf32> to vector<8x128xf32>
    %108 = vector.broadcast %3 : vector<1x128xf32> to vector<8x128xf32>
    %109 = arith.addf %107, %108 : vector<8x128xf32>
    %110 = arith.mulf %95, %109 : vector<8x128xf32>
    %111 = arith.addf %106, %110 : vector<8x128xf32>
    %112 = math.tanh %111 : vector<8x128xf32>
    %cst_34 = arith.constant 1.000000e+00 : f32
    %113 = vector.broadcast %cst_34 : f32 to vector<8x128xf32>
    %114 = arith.subf %113, %105 : vector<8x128xf32>
    %115 = arith.mulf %114, %112 : vector<8x128xf32>
    %116 = arith.mulf %105, %82 : vector<8x128xf32>
    %117 = arith.addf %115, %116 : vector<8x128xf32>
    %118 = vector.extract_strided_slice %11 {offsets = [3, 0, 0], sizes = [1, 8, 384], strides = [1, 1, 1]} : vector<8x8x384xf32> to vector<1x8x384xf32>
    %119 = vector.shape_cast %118 : vector<1x8x384xf32> to vector<8x384xf32>
    %cst_35 = arith.constant dense<0.000000e+00> : vector<8x384xf32>
    %120 = tpu.matmul %117, %1, %cst_35 {dimension_numbers = #tpu.dot_dimension_numbers<[1], [0], [0], [1], [0, 0, 1, 1], [], []>} : vector<8x128xf32>, vector<128x384xf32>, vector<8x384xf32> -> vector<8x384xf32>
    %121 = vector.extract_strided_slice %119 {offsets = [0, 0], sizes = [8, 128], strides = [1, 1]} : vector<8x384xf32> to vector<8x128xf32>
    %122 = vector.extract_strided_slice %120 {offsets = [0, 0], sizes = [8, 128], strides = [1, 1]} : vector<8x384xf32> to vector<8x128xf32>
    %123 = arith.addf %121, %122 : vector<8x128xf32>
    %cst_36 = arith.constant 5.000000e-01 : f32
    %124 = vector.broadcast %cst_36 : f32 to vector<8x128xf32>
    %125 = arith.mulf %124, %123 : vector<8x128xf32>
    %126 = math.tanh %125 : vector<8x128xf32>
    %cst_37 = arith.constant 1.000000e+00 : f32
    %127 = vector.broadcast %cst_37 : f32 to vector<8x128xf32>
    %128 = arith.addf %126, %127 : vector<8x128xf32>
    %cst_38 = arith.constant 5.000000e-01 : f32
    %129 = vector.broadcast %cst_38 : f32 to vector<8x128xf32>
    %130 = arith.mulf %129, %128 : vector<8x128xf32>
    %131 = vector.extract_strided_slice %119 {offsets = [0, 128], sizes = [8, 128], strides = [1, 1]} : vector<8x384xf32> to vector<8x128xf32>
    %132 = vector.extract_strided_slice %120 {offsets = [0, 128], sizes = [8, 128], strides = [1, 1]} : vector<8x384xf32> to vector<8x128xf32>
    %133 = arith.addf %131, %132 : vector<8x128xf32>
    %cst_39 = arith.constant 5.000000e-01 : f32
    %134 = vector.broadcast %cst_39 : f32 to vector<8x128xf32>
    %135 = arith.mulf %134, %133 : vector<8x128xf32>
    %136 = math.tanh %135 : vector<8x128xf32>
    %cst_40 = arith.constant 1.000000e+00 : f32
    %137 = vector.broadcast %cst_40 : f32 to vector<8x128xf32>
    %138 = arith.addf %136, %137 : vector<8x128xf32>
    %cst_41 = arith.constant 5.000000e-01 : f32
    %139 = vector.broadcast %cst_41 : f32 to vector<8x128xf32>
    %140 = arith.mulf %139, %138 : vector<8x128xf32>
    %141 = vector.extract_strided_slice %119 {offsets = [0, 256], sizes = [8, 128], strides = [1, 1]} : vector<8x384xf32> to vector<8x128xf32>
    %142 = vector.extract_strided_slice %120 {offsets = [0, 256], sizes = [8, 128], strides = [1, 1]} : vector<8x384xf32> to vector<8x128xf32>
    %143 = vector.broadcast %3 : vector<1x128xf32> to vector<8x128xf32>
    %144 = arith.addf %142, %143 : vector<8x128xf32>
    %145 = arith.mulf %130, %144 : vector<8x128xf32>
    %146 = arith.addf %141, %145 : vector<8x128xf32>
    %147 = math.tanh %146 : vector<8x128xf32>
    %cst_42 = arith.constant 1.000000e+00 : f32
    %148 = vector.broadcast %cst_42 : f32 to vector<8x128xf32>
    %149 = arith.subf %148, %140 : vector<8x128xf32>
    %150 = arith.mulf %149, %147 : vector<8x128xf32>
    %151 = arith.mulf %140, %117 : vector<8x128xf32>
    %152 = arith.addf %150, %151 : vector<8x128xf32>
    %153 = vector.extract_strided_slice %11 {offsets = [4, 0, 0], sizes = [1, 8, 384], strides = [1, 1, 1]} : vector<8x8x384xf32> to vector<1x8x384xf32>
    %154 = vector.shape_cast %153 : vector<1x8x384xf32> to vector<8x384xf32>
    %cst_43 = arith.constant dense<0.000000e+00> : vector<8x384xf32>
    %155 = tpu.matmul %152, %1, %cst_43 {dimension_numbers = #tpu.dot_dimension_numbers<[1], [0], [0], [1], [0, 0, 1, 1], [], []>} : vector<8x128xf32>, vector<128x384xf32>, vector<8x384xf32> -> vector<8x384xf32>
    %156 = vector.extract_strided_slice %154 {offsets = [0, 0], sizes = [8, 128], strides = [1, 1]} : vector<8x384xf32> to vector<8x128xf32>
    %157 = vector.extract_strided_slice %155 {offsets = [0, 0], sizes = [8, 128], strides = [1, 1]} : vector<8x384xf32> to vector<8x128xf32>
    %158 = arith.addf %156, %157 : vector<8x128xf32>
    %cst_44 = arith.constant 5.000000e-01 : f32
    %159 = vector.broadcast %cst_44 : f32 to vector<8x128xf32>
    %160 = arith.mulf %159, %158 : vector<8x128xf32>
    %161 = math.tanh %160 : vector<8x128xf32>
    %cst_45 = arith.constant 1.000000e+00 : f32
    %162 = vector.broadcast %cst_45 : f32 to vector<8x128xf32>
    %163 = arith.addf %161, %162 : vector<8x128xf32>
    %cst_46 = arith.constant 5.000000e-01 : f32
    %164 = vector.broadcast %cst_46 : f32 to vector<8x128xf32>
    %165 = arith.mulf %164, %163 : vector<8x128xf32>
    %166 = vector.extract_strided_slice %154 {offsets = [0, 128], sizes = [8, 128], strides = [1, 1]} : vector<8x384xf32> to vector<8x128xf32>
    %167 = vector.extract_strided_slice %155 {offsets = [0, 128], sizes = [8, 128], strides = [1, 1]} : vector<8x384xf32> to vector<8x128xf32>
    %168 = arith.addf %166, %167 : vector<8x128xf32>
    %cst_47 = arith.constant 5.000000e-01 : f32
    %169 = vector.broadcast %cst_47 : f32 to vector<8x128xf32>
    %170 = arith.mulf %169, %168 : vector<8x128xf32>
    %171 = math.tanh %170 : vector<8x128xf32>
    %cst_48 = arith.constant 1.000000e+00 : f32
    %172 = vector.broadcast %cst_48 : f32 to vector<8x128xf32>
    %173 = arith.addf %171, %172 : vector<8x128xf32>
    %cst_49 = arith.constant 5.000000e-01 : f32
    %174 = vector.broadcast %cst_49 : f32 to vector<8x128xf32>
    %175 = arith.mulf %174, %173 : vector<8x128xf32>
    %176 = vector.extract_strided_slice %154 {offsets = [0, 256], sizes = [8, 128], strides = [1, 1]} : vector<8x384xf32> to vector<8x128xf32>
    %177 = vector.extract_strided_slice %155 {offsets = [0, 256], sizes = [8, 128], strides = [1, 1]} : vector<8x384xf32> to vector<8x128xf32>
    %178 = vector.broadcast %3 : vector<1x128xf32> to vector<8x128xf32>
    %179 = arith.addf %177, %178 : vector<8x128xf32>
    %180 = arith.mulf %165, %179 : vector<8x128xf32>
    %181 = arith.addf %176, %180 : vector<8x128xf32>
    %182 = math.tanh %181 : vector<8x128xf32>
    %cst_50 = arith.constant 1.000000e+00 : f32
    %183 = vector.broadcast %cst_50 : f32 to vector<8x128xf32>
    %184 = arith.subf %183, %175 : vector<8x128xf32>
    %185 = arith.mulf %184, %182 : vector<8x128xf32>
    %186 = arith.mulf %175, %152 : vector<8x128xf32>
    %187 = arith.addf %185, %186 : vector<8x128xf32>
    %188 = vector.extract_strided_slice %11 {offsets = [5, 0, 0], sizes = [1, 8, 384], strides = [1, 1, 1]} : vector<8x8x384xf32> to vector<1x8x384xf32>
    %189 = vector.shape_cast %188 : vector<1x8x384xf32> to vector<8x384xf32>
    %cst_51 = arith.constant dense<0.000000e+00> : vector<8x384xf32>
    %190 = tpu.matmul %187, %1, %cst_51 {dimension_numbers = #tpu.dot_dimension_numbers<[1], [0], [0], [1], [0, 0, 1, 1], [], []>} : vector<8x128xf32>, vector<128x384xf32>, vector<8x384xf32> -> vector<8x384xf32>
    %191 = vector.extract_strided_slice %189 {offsets = [0, 0], sizes = [8, 128], strides = [1, 1]} : vector<8x384xf32> to vector<8x128xf32>
    %192 = vector.extract_strided_slice %190 {offsets = [0, 0], sizes = [8, 128], strides = [1, 1]} : vector<8x384xf32> to vector<8x128xf32>
    %193 = arith.addf %191, %192 : vector<8x128xf32>
    %cst_52 = arith.constant 5.000000e-01 : f32
    %194 = vector.broadcast %cst_52 : f32 to vector<8x128xf32>
    %195 = arith.mulf %194, %193 : vector<8x128xf32>
    %196 = math.tanh %195 : vector<8x128xf32>
    %cst_53 = arith.constant 1.000000e+00 : f32
    %197 = vector.broadcast %cst_53 : f32 to vector<8x128xf32>
    %198 = arith.addf %196, %197 : vector<8x128xf32>
    %cst_54 = arith.constant 5.000000e-01 : f32
    %199 = vector.broadcast %cst_54 : f32 to vector<8x128xf32>
    %200 = arith.mulf %199, %198 : vector<8x128xf32>
    %201 = vector.extract_strided_slice %189 {offsets = [0, 128], sizes = [8, 128], strides = [1, 1]} : vector<8x384xf32> to vector<8x128xf32>
    %202 = vector.extract_strided_slice %190 {offsets = [0, 128], sizes = [8, 128], strides = [1, 1]} : vector<8x384xf32> to vector<8x128xf32>
    %203 = arith.addf %201, %202 : vector<8x128xf32>
    %cst_55 = arith.constant 5.000000e-01 : f32
    %204 = vector.broadcast %cst_55 : f32 to vector<8x128xf32>
    %205 = arith.mulf %204, %203 : vector<8x128xf32>
    %206 = math.tanh %205 : vector<8x128xf32>
    %cst_56 = arith.constant 1.000000e+00 : f32
    %207 = vector.broadcast %cst_56 : f32 to vector<8x128xf32>
    %208 = arith.addf %206, %207 : vector<8x128xf32>
    %cst_57 = arith.constant 5.000000e-01 : f32
    %209 = vector.broadcast %cst_57 : f32 to vector<8x128xf32>
    %210 = arith.mulf %209, %208 : vector<8x128xf32>
    %211 = vector.extract_strided_slice %189 {offsets = [0, 256], sizes = [8, 128], strides = [1, 1]} : vector<8x384xf32> to vector<8x128xf32>
    %212 = vector.extract_strided_slice %190 {offsets = [0, 256], sizes = [8, 128], strides = [1, 1]} : vector<8x384xf32> to vector<8x128xf32>
    %213 = vector.broadcast %3 : vector<1x128xf32> to vector<8x128xf32>
    %214 = arith.addf %212, %213 : vector<8x128xf32>
    %215 = arith.mulf %200, %214 : vector<8x128xf32>
    %216 = arith.addf %211, %215 : vector<8x128xf32>
    %217 = math.tanh %216 : vector<8x128xf32>
    %cst_58 = arith.constant 1.000000e+00 : f32
    %218 = vector.broadcast %cst_58 : f32 to vector<8x128xf32>
    %219 = arith.subf %218, %210 : vector<8x128xf32>
    %220 = arith.mulf %219, %217 : vector<8x128xf32>
    %221 = arith.mulf %210, %187 : vector<8x128xf32>
    %222 = arith.addf %220, %221 : vector<8x128xf32>
    %223 = vector.extract_strided_slice %11 {offsets = [6, 0, 0], sizes = [1, 8, 384], strides = [1, 1, 1]} : vector<8x8x384xf32> to vector<1x8x384xf32>
    %224 = vector.shape_cast %223 : vector<1x8x384xf32> to vector<8x384xf32>
    %cst_59 = arith.constant dense<0.000000e+00> : vector<8x384xf32>
    %225 = tpu.matmul %222, %1, %cst_59 {dimension_numbers = #tpu.dot_dimension_numbers<[1], [0], [0], [1], [0, 0, 1, 1], [], []>} : vector<8x128xf32>, vector<128x384xf32>, vector<8x384xf32> -> vector<8x384xf32>
    %226 = vector.extract_strided_slice %224 {offsets = [0, 0], sizes = [8, 128], strides = [1, 1]} : vector<8x384xf32> to vector<8x128xf32>
    %227 = vector.extract_strided_slice %225 {offsets = [0, 0], sizes = [8, 128], strides = [1, 1]} : vector<8x384xf32> to vector<8x128xf32>
    %228 = arith.addf %226, %227 : vector<8x128xf32>
    %cst_60 = arith.constant 5.000000e-01 : f32
    %229 = vector.broadcast %cst_60 : f32 to vector<8x128xf32>
    %230 = arith.mulf %229, %228 : vector<8x128xf32>
    %231 = math.tanh %230 : vector<8x128xf32>
    %cst_61 = arith.constant 1.000000e+00 : f32
    %232 = vector.broadcast %cst_61 : f32 to vector<8x128xf32>
    %233 = arith.addf %231, %232 : vector<8x128xf32>
    %cst_62 = arith.constant 5.000000e-01 : f32
    %234 = vector.broadcast %cst_62 : f32 to vector<8x128xf32>
    %235 = arith.mulf %234, %233 : vector<8x128xf32>
    %236 = vector.extract_strided_slice %224 {offsets = [0, 128], sizes = [8, 128], strides = [1, 1]} : vector<8x384xf32> to vector<8x128xf32>
    %237 = vector.extract_strided_slice %225 {offsets = [0, 128], sizes = [8, 128], strides = [1, 1]} : vector<8x384xf32> to vector<8x128xf32>
    %238 = arith.addf %236, %237 : vector<8x128xf32>
    %cst_63 = arith.constant 5.000000e-01 : f32
    %239 = vector.broadcast %cst_63 : f32 to vector<8x128xf32>
    %240 = arith.mulf %239, %238 : vector<8x128xf32>
    %241 = math.tanh %240 : vector<8x128xf32>
    %cst_64 = arith.constant 1.000000e+00 : f32
    %242 = vector.broadcast %cst_64 : f32 to vector<8x128xf32>
    %243 = arith.addf %241, %242 : vector<8x128xf32>
    %cst_65 = arith.constant 5.000000e-01 : f32
    %244 = vector.broadcast %cst_65 : f32 to vector<8x128xf32>
    %245 = arith.mulf %244, %243 : vector<8x128xf32>
    %246 = vector.extract_strided_slice %224 {offsets = [0, 256], sizes = [8, 128], strides = [1, 1]} : vector<8x384xf32> to vector<8x128xf32>
    %247 = vector.extract_strided_slice %225 {offsets = [0, 256], sizes = [8, 128], strides = [1, 1]} : vector<8x384xf32> to vector<8x128xf32>
    %248 = vector.broadcast %3 : vector<1x128xf32> to vector<8x128xf32>
    %249 = arith.addf %247, %248 : vector<8x128xf32>
    %250 = arith.mulf %235, %249 : vector<8x128xf32>
    %251 = arith.addf %246, %250 : vector<8x128xf32>
    %252 = math.tanh %251 : vector<8x128xf32>
    %cst_66 = arith.constant 1.000000e+00 : f32
    %253 = vector.broadcast %cst_66 : f32 to vector<8x128xf32>
    %254 = arith.subf %253, %245 : vector<8x128xf32>
    %255 = arith.mulf %254, %252 : vector<8x128xf32>
    %256 = arith.mulf %245, %222 : vector<8x128xf32>
    %257 = arith.addf %255, %256 : vector<8x128xf32>
    %258 = vector.extract_strided_slice %11 {offsets = [7, 0, 0], sizes = [1, 8, 384], strides = [1, 1, 1]} : vector<8x8x384xf32> to vector<1x8x384xf32>
    %259 = vector.shape_cast %258 : vector<1x8x384xf32> to vector<8x384xf32>
    %cst_67 = arith.constant dense<0.000000e+00> : vector<8x384xf32>
    %260 = tpu.matmul %257, %1, %cst_67 {dimension_numbers = #tpu.dot_dimension_numbers<[1], [0], [0], [1], [0, 0, 1, 1], [], []>} : vector<8x128xf32>, vector<128x384xf32>, vector<8x384xf32> -> vector<8x384xf32>
    %261 = vector.extract_strided_slice %259 {offsets = [0, 0], sizes = [8, 128], strides = [1, 1]} : vector<8x384xf32> to vector<8x128xf32>
    %262 = vector.extract_strided_slice %260 {offsets = [0, 0], sizes = [8, 128], strides = [1, 1]} : vector<8x384xf32> to vector<8x128xf32>
    %263 = arith.addf %261, %262 : vector<8x128xf32>
    %cst_68 = arith.constant 5.000000e-01 : f32
    %264 = vector.broadcast %cst_68 : f32 to vector<8x128xf32>
    %265 = arith.mulf %264, %263 : vector<8x128xf32>
    %266 = math.tanh %265 : vector<8x128xf32>
    %cst_69 = arith.constant 1.000000e+00 : f32
    %267 = vector.broadcast %cst_69 : f32 to vector<8x128xf32>
    %268 = arith.addf %266, %267 : vector<8x128xf32>
    %cst_70 = arith.constant 5.000000e-01 : f32
    %269 = vector.broadcast %cst_70 : f32 to vector<8x128xf32>
    %270 = arith.mulf %269, %268 : vector<8x128xf32>
    %271 = vector.extract_strided_slice %259 {offsets = [0, 128], sizes = [8, 128], strides = [1, 1]} : vector<8x384xf32> to vector<8x128xf32>
    %272 = vector.extract_strided_slice %260 {offsets = [0, 128], sizes = [8, 128], strides = [1, 1]} : vector<8x384xf32> to vector<8x128xf32>
    %273 = arith.addf %271, %272 : vector<8x128xf32>
    %cst_71 = arith.constant 5.000000e-01 : f32
    %274 = vector.broadcast %cst_71 : f32 to vector<8x128xf32>
    %275 = arith.mulf %274, %273 : vector<8x128xf32>
    %276 = math.tanh %275 : vector<8x128xf32>
    %cst_72 = arith.constant 1.000000e+00 : f32
    %277 = vector.broadcast %cst_72 : f32 to vector<8x128xf32>
    %278 = arith.addf %276, %277 : vector<8x128xf32>
    %cst_73 = arith.constant 5.000000e-01 : f32
    %279 = vector.broadcast %cst_73 : f32 to vector<8x128xf32>
    %280 = arith.mulf %279, %278 : vector<8x128xf32>
    %281 = vector.extract_strided_slice %259 {offsets = [0, 256], sizes = [8, 128], strides = [1, 1]} : vector<8x384xf32> to vector<8x128xf32>
    %282 = vector.extract_strided_slice %260 {offsets = [0, 256], sizes = [8, 128], strides = [1, 1]} : vector<8x384xf32> to vector<8x128xf32>
    %283 = vector.broadcast %3 : vector<1x128xf32> to vector<8x128xf32>
    %284 = arith.addf %282, %283 : vector<8x128xf32>
    %285 = arith.mulf %270, %284 : vector<8x128xf32>
    %286 = arith.addf %281, %285 : vector<8x128xf32>
    %287 = math.tanh %286 : vector<8x128xf32>
    %cst_74 = arith.constant 1.000000e+00 : f32
    %288 = vector.broadcast %cst_74 : f32 to vector<8x128xf32>
    %289 = arith.subf %288, %280 : vector<8x128xf32>
    %290 = arith.mulf %289, %287 : vector<8x128xf32>
    %291 = arith.mulf %280, %257 : vector<8x128xf32>
    %292 = arith.addf %290, %291 : vector<8x128xf32>
    %c0_75 = arith.constant 0 : index
    %c0_76 = arith.constant 0 : index
    %293 = vector.load %arg9[%c0_75, %c0_76] : memref<8x128xf32, #tpu.memory_space<vmem>>, vector<8x128xf32>
    tpu.vector_store %arg9[%c0_75, %c0_76], %292 {strides = array<i32>} : memref<8x128xf32, #tpu.memory_space<vmem>>, vector<8x128xf32>,
    %c0_77 = arith.constant 0 : index
    %c0_78 = arith.constant 0 : index
    %294 = vector.load %arg6[%c0_77, %c0_78] : memref<128x128xf32, #tpu.memory_space<vmem>>, vector<128x128xf32>
    %cst_79 = arith.constant dense<0.000000e+00> : vector<8x128xf32>
    %295 = tpu.matmul %292, %294, %cst_79 {dimension_numbers = #tpu.dot_dimension_numbers<[1], [0], [0], [1], [0, 0, 1, 1], [], []>} : vector<8x128xf32>, vector<128x128xf32>, vector<8x128xf32> -> vector<8x128xf32>
    %c0_80 = arith.constant 0 : index
    %c0_81 = arith.constant 0 : index
    %296 = vector.load %arg7[%c0_80, %c0_81] : memref<1x128xf32, #tpu.memory_space<vmem>>, vector<1x128xf32>
    %297 = vector.broadcast %296 : vector<1x128xf32> to vector<8x128xf32>
    %298 = arith.addf %295, %297 : vector<8x128xf32>
    %cst_82 = arith.constant dense<0xFF800000> : vector<8xf32>
    %299 = vector.multi_reduction <maximumf>, %298, %cst_82 [1] : vector<8x128xf32> to vector<8xf32>
    %300 = vector.shape_cast %299 : vector<8xf32> to vector<8x1xf32>
    %301 = vector.broadcast %300 : vector<8x1xf32> to vector<8x128xf32>
    %302 = arith.subf %298, %301 : vector<8x128xf32>
    %303 = math.exp %302 : vector<8x128xf32>
    %cst_83 = arith.constant dense<0.000000e+00> : vector<8xf32>
    %304 = vector.multi_reduction <add>, %303, %cst_83 [1] : vector<8x128xf32> to vector<8xf32>
    %305 = vector.shape_cast %304 : vector<8xf32> to vector<8x1xf32>
    %306 = math.log %305 : vector<8x1xf32>
    %307 = vector.broadcast %306 : vector<8x1xf32> to vector<8x128xf32>
    %308 = arith.subf %302, %307 : vector<8x128xf32>
    %c0_84 = arith.constant 0 : index
    %c0_85 = arith.constant 0 : index
    %309 = vector.load %arg8[%c0_84, %c0_85] : memref<8x128xf32, #tpu.memory_space<vmem>>, vector<8x128xf32>
    tpu.vector_store %arg8[%c0_84, %c0_85], %308 {strides = array<i32>} : memref<8x128xf32, #tpu.memory_space<vmem>>, vector<8x128xf32>,
    return
  }
}

</mosaic_0001>

<llo_original>
// kernel: tpu_custom_call.1
$region0: #{tpu_custom_call.1}
  #allocation0 [shape = 'u32[]', space=smem, size = 0x4, offset = 0x4, fixed_abs, tag = 'smem constant byte address 0x4 - core index']
  #allocation1 [shape = 'u32[144,128]{1,0:T(1,128)}', space=vmem, size = 0x12000, scoped, tag = 'internal scratch']
  %s0 = inlined_call_operand.vmem [shape: f32[8,8,1], index: 0, kind: input, shape index: {}]
  %s1 = inlined_call_operand.vmem [shape: f32[8,128], index: 1, kind: input, shape index: {}]
  %s2 = inlined_call_operand.vmem [shape: f32[1,384], index: 2, kind: input, shape index: {}]
  %s3 = inlined_call_operand.hbm [shape: f32[128,384], index: 3, kind: input, shape index: {}]
  %s4 = inlined_call_operand.vmem [shape: f32[1,384], index: 4, kind: input, shape index: {}]
  %s5 = inlined_call_operand.vmem [shape: f32[1,128], index: 5, kind: input, shape index: {}]
  %s6 = inlined_call_operand.hbm [shape: f32[128,128], index: 6, kind: input, shape index: {}]
  %s7 = inlined_call_operand.vmem [shape: f32[1,128], index: 7, kind: input, shape index: {}]
  %s8 = inlined_call_operand.hbm [shape: f32[8,128], index: 8, kind: output, shape index: {0}]
  %s9 = inlined_call_operand.hbm [shape: f32[8,128], index: 9, kind: output, shape index: {1}]
  %10 = xla_tuple %s8, %s9
  %s11 = sld [smem:[#allocation0]]
  $region58: #{tpu_custom_call.1} parent=0
    _
  %s13 = ssub.s32 1, %s11
  %s14 = scalar_select 0, %s13, %s11
  $region1: #{tpu_custom_call.1} parent=0
    #allocation2 [shape = 'u8[196608]{0}', space=vmem, size = 0x30000, scoped, tag = 'input window, operand 3, single buffered']
    #allocation3 [shape = 's32[1]{0}', space=sflag, size = 0x4, scoped, tag = 'scoped memory for tpu_custom_call.1']
    #allocation4 [shape = 's32[1]{0}', space=sflag, size = 0x4, scoped, tag = 'scoped memory for tpu_custom_call.1']
    #allocation5 [shape = 'u8[65536]{0}', space=vmem, size = 0x10000, scoped, tag = 'input window, operand 6, single buffered']
    #allocation6 [shape = 's32[1]{0}', space=sflag, size = 0x4, scoped, tag = 'scoped memory for tpu_custom_call.1']
    #allocation7 [shape = 'u8[4096]{0}', space=vmem, size = 0x1000, scoped, tag = 'output window, operand 0, single buffered']
    #allocation8 [shape = 'u8[4096]{0}', space=vmem, size = 0x1000, scoped, tag = 'output window, operand 1, single buffered']
    #allocation9 [shape = 's32[1]{0}', space=sflag, size = 0x4, scoped, tag = 'scoped memory for tpu_custom_call.1']
    %15 = vsyncpa [#allocation3], 0
    %16 = vsyncpa [#allocation6], 0
    %17 = vsyncpa [#allocation4], 0
    %18 = vsyncpa [#allocation9], 0
    // Predicated region
    $region2: #{tpu_custom_call.1} parent=1 // pred_check
      _
    $region3: #{tpu_custom_call.1} parent=1 // pred_check_branch
      %20 = sbr.rel (0) target = $region5
    $region4: #{tpu_custom_call.1} parent=1 // pred_region
      _
    $region5: #{tpu_custom_call.1} parent=1 // pred_fallthru
      _
    // Predicated region
    $region6: #{tpu_custom_call.1} parent=1 // pred_check
      _
    $region7: #{tpu_custom_call.1} parent=1 // pred_check_branch
      %22 = sbr.rel (0) target = $region9
    $region8: #{tpu_custom_call.1} parent=1 // pred_region
      _
    $region9: #{tpu_custom_call.1} parent=1 // pred_fallthru
      _
    // Predicated region
    $region10: #{tpu_custom_call.1} parent=1 // pred_check
      _
    $region11: #{tpu_custom_call.1} parent=1 // pred_check_branch
      %24 = sbr.rel (0) target = $region13
    $region12: #{tpu_custom_call.1} parent=1 // pred_region
      _
    $region13: #{tpu_custom_call.1} parent=1 // pred_fallthru
      _
    // Predicated region
    $region14: #{tpu_custom_call.1} parent=1 // pred_check
      _
    $region15: #{tpu_custom_call.1} parent=1 // pred_check_branch
      %26 = sbr.rel (0) target = $region17
    $region16: #{tpu_custom_call.1} parent=1 // pred_region
      %s28 = ssub.s32 6144, 6144
      %29 = vsyncadd [#allocation3], %s28
      %s30 = sshll.u32 [#allocation2], 4
      %s31 = int_to_ptr.vmem [resolvable:$true] %s30
      %36 = dma.hbm_to_vmem [thread:$0]  %s3, 6144, %s31, [#allocation3], 384, 384, 24
    $region17: #{tpu_custom_call.1} parent=1 // pred_fallthru
      _
    // Predicated region
    $region18: #{tpu_custom_call.1} parent=1 // pred_check
      _
    $region19: #{tpu_custom_call.1} parent=1 // pred_check_branch
      %38 = sbr.rel (0) target = $region21
    $region20: #{tpu_custom_call.1} parent=1 // pred_region
      _
    $region21: #{tpu_custom_call.1} parent=1 // pred_fallthru
      _
    // Predicated region
    $region22: #{tpu_custom_call.1} parent=1 // pred_check
      _
    $region23: #{tpu_custom_call.1} parent=1 // pred_check_branch
      %40 = sbr.rel (0) target = $region25
    $region24: #{tpu_custom_call.1} parent=1 // pred_region
      _
    $region25: #{tpu_custom_call.1} parent=1 // pred_fallthru
      _
    // Predicated region
    $region26: #{tpu_custom_call.1} parent=1 // pred_check
      _
    $region27: #{tpu_custom_call.1} parent=1 // pred_check_branch
      %42 = sbr.rel (0) target = $region29
    $region28: #{tpu_custom_call.1} parent=1 // pred_region
      %s44 = ssub.s32 2048, 2048
      %45 = vsyncadd [#allocation6], %s44
      %s46 = sshll.u32 [#allocation5], 4
      %s47 = int_to_ptr.vmem [resolvable:$true] %s46
      %52 = dma.hbm_to_vmem [thread:$0]  %s6, 2048, %s47, [#allocation6], 128, 128, 8
    $region29: #{tpu_custom_call.1} parent=1 // pred_fallthru
      _
    // Predicated region
    $region30: #{tpu_custom_call.1} parent=1 // pred_check
      _
    $region31: #{tpu_custom_call.1} parent=1 // pred_check_branch
      %54 = sbr.rel (0) target = $region33
    $region32: #{tpu_custom_call.1} parent=1 // pred_region
      _
    $region33: #{tpu_custom_call.1} parent=1 // pred_fallthru
      _
    // Predicated region
    $region34: #{tpu_custom_call.1} parent=1 // pred_check
      _
    $region35: #{tpu_custom_call.1} parent=1 // pred_check_branch
      %56 = sbr.rel (0) target = $region37
    $region36: #{tpu_custom_call.1} parent=1 // pred_region
      %57 = dma.done [#allocation3], 6144
    $region37: #{tpu_custom_call.1} parent=1 // pred_fallthru
      _
    // Predicated region
    $region38: #{tpu_custom_call.1} parent=1 // pred_check
      _
    $region39: #{tpu_custom_call.1} parent=1 // pred_check_branch
      %59 = sbr.rel (0) target = $region41
    $region40: #{tpu_custom_call.1} parent=1 // pred_region
      %60 = dma.done [#allocation6], 2048
    $region41: #{tpu_custom_call.1} parent=1 // pred_fallthru
      _
    %v61 = vld [vmem:[%s2] sm:$0x7]
    %v62 = vld [vmem:[#allocation2] sm:$0xff]
    %v63 = vld [vmem:[#allocation2 + $0x8] sm:$0xff]
    %v64 = vld [vmem:[#allocation2 + $0x10] sm:$0xff]
    %v65 = vld [vmem:[#allocation2 + $0x18] sm:$0xff]
    %v66 = vld [vmem:[#allocation2 + $0x20] sm:$0xff]
    %v67 = vld [vmem:[#allocation2 + $0x28] sm:$0xff]
    %v68 = vld [vmem:[#allocation2 + $0x30] sm:$0xff]
    %v69 = vld [vmem:[#allocation2 + $0x38] sm:$0xff]
    %v70 = vld [vmem:[#allocation2 + $0x40] sm:$0xff]
    %v71 = vld [vmem:[#allocation2 + $0x48] sm:$0xff]
    %v72 = vld [vmem:[#allocation2 + $0x50] sm:$0xff]
    %v73 = vld [vmem:[#allocation2 + $0x58] sm:$0xff]
    %v74 = vld [vmem:[#allocation2 + $0x60] sm:$0xff]
    %v75 = vld [vmem:[#allocation2 + $0x68] sm:$0xff]
    %v76 = vld [vmem:[#allocation2 + $0x70] sm:$0xff]
    %v77 = vld [vmem:[#allocation2 + $0x78] sm:$0xff]
    %v78 = vld [vmem:[#allocation2 + $0x80] sm:$0xff]
    %v79 = vld [vmem:[#allocation2 + $0x88] sm:$0xff]
    %v80 = vld [vmem:[#allocation2 + $0x90] sm:$0xff]
    %v81 = vld [vmem:[#allocation2 + $0x98] sm:$0xff]
    %v82 = vld [vmem:[#allocation2 + $0xa0] sm:$0xff]
    %v83 = vld [vmem:[#allocation2 + $0xa8] sm:$0xff]
    %v84 = vld [vmem:[#allocation2 + $0xb0] sm:$0xff]
    %v85 = vld [vmem:[#allocation2 + $0xb8] sm:$0xff]
    %v86 = vld [vmem:[#allocation2 + $0xc0] sm:$0xff]
    %v87 = vld [vmem:[#allocation2 + $0xc8] sm:$0xff]
    %v88 = vld [vmem:[#allocation2 + $0xd0] sm:$0xff]
    %v89 = vld [vmem:[#allocation2 + $0xd8] sm:$0xff]
    %v90 = vld [vmem:[#allocation2 + $0xe0] sm:$0xff]
    %v91 = vld [vmem:[#allocation2 + $0xe8] sm:$0xff]
    %v92 = vld [vmem:[#allocation2 + $0xf0] sm:$0xff]
    %v93 = vld [vmem:[#allocation2 + $0xf8] sm:$0xff]
    %v94 = vld [vmem:[#allocation2 + $0x100] sm:$0xff]
    %v95 = vld [vmem:[#allocation2 + $0x108] sm:$0xff]
    %v96 = vld [vmem:[#allocation2 + $0x110] sm:$0xff]
    %v97 = vld [vmem:[#allocation2 + $0x118] sm:$0xff]
    %v98 = vld [vmem:[#allocation2 + $0x120] sm:$0xff]
    %v99 = vld [vmem:[#allocation2 + $0x128] sm:$0xff]
    %v100 = vld [vmem:[#allocation2 + $0x130] sm:$0xff]
    %v101 = vld [vmem:[#allocation2 + $0x138] sm:$0xff]
    %v102 = vld [vmem:[#allocation2 + $0x140] sm:$0xff]
    %v103 = vld [vmem:[#allocation2 + $0x148] sm:$0xff]
    %v104 = vld [vmem:[#allocation2 + $0x150] sm:$0xff]
    %v105 = vld [vmem:[#allocation2 + $0x158] sm:$0xff]
    %v106 = vld [vmem:[#allocation2 + $0x160] sm:$0xff]
    %v107 = vld [vmem:[#allocation2 + $0x168] sm:$0xff]
    %v108 = vld [vmem:[#allocation2 + $0x170] sm:$0xff]
    %v109 = vld [vmem:[#allocation2 + $0x178] sm:$0xff]
    %v110 = vld [vmem:[%s4] sm:$0x7]
    %v111 = vld [vmem:[%s5] sm:$0x1]
    %v112 = vld [vmem:[%s0] sm:$0xff]
    %v113 = vld [vmem:[%s0 + $0x8] sm:$0xff]
    %v114 = vld [vmem:[%s0 + $0x10] sm:$0xff]
    %v115 = vld [vmem:[%s0 + $0x18] sm:$0xff]
    %v116 = vld [vmem:[%s0 + $0x20] sm:$0xff]
    %v117 = vld [vmem:[%s0 + $0x28] sm:$0xff]
    %v118 = vld [vmem:[%s0 + $0x30] sm:$0xff]
    %v119 = vld [vmem:[%s0 + $0x38] sm:$0xff]
    %121 = vset.pattern.permute.xlu0 0
    %122 = vperm.xlu0 %121, %v112
    %v123 = vpop.permute.xlu0 %122
    %126 = vset.pattern.permute.xlu0 0
    %127 = vperm.xlu0 %126, %v113
    %v128 = vpop.permute.xlu0 %127
    %131 = vset.pattern.permute.xlu0 0
    %132 = vperm.xlu0 %131, %v114
    %v133 = vpop.permute.xlu0 %132
    %136 = vset.pattern.permute.xlu0 0
    %137 = vperm.xlu0 %136, %v115
    %v138 = vpop.permute.xlu0 %137
    %141 = vset.pattern.permute.xlu0 0
    %142 = vperm.xlu0 %141, %v116
    %v143 = vpop.permute.xlu0 %142
    %146 = vset.pattern.permute.xlu0 0
    %147 = vperm.xlu0 %146, %v117
    %v148 = vpop.permute.xlu0 %147
    %151 = vset.pattern.permute.xlu0 0
    %152 = vperm.xlu0 %151, %v118
    %v153 = vpop.permute.xlu0 %152
    %156 = vset.pattern.permute.xlu0 0
    %157 = vperm.xlu0 %156, %v119
    %v158 = vpop.permute.xlu0 %157
    %v161 = vlaneseq
    %v162 = vshrl.u32 %v161, 7
    %v163 = vsub.s32 0, %v162
    %v164 = vrot.slane %v61, %v163
    %v165 = vlaneseq
    %v166 = vshrl.u32 %v165, 7
    %v167 = vsub.s32 1, %v166
    %v168 = vrot.slane %v61, %v167
    %v169 = vlaneseq
    %v170 = vshrl.u32 %v169, 7
    %v171 = vsub.s32 2, %v170
    %v172 = vrot.slane %v61, %v171
    %v176 = vmul.f32 %v123, %v164
    %v177 = vmul.f32 %v123, %v168
    %v178 = vmul.f32 %v123, %v172
    %v179 = vmul.f32 %v128, %v164
    %v180 = vmul.f32 %v128, %v168
    %v181 = vmul.f32 %v128, %v172
    %v182 = vmul.f32 %v133, %v164
    %v183 = vmul.f32 %v133, %v168
    %v184 = vmul.f32 %v133, %v172
    %v185 = vmul.f32 %v138, %v164
    %v186 = vmul.f32 %v138, %v168
    %v187 = vmul.f32 %v138, %v172
    %v188 = vmul.f32 %v143, %v164
    %v189 = vmul.f32 %v143, %v168
    %v190 = vmul.f32 %v143, %v172
    %v191 = vmul.f32 %v148, %v164
    %v192 = vmul.f32 %v148, %v168
    %v193 = vmul.f32 %v148, %v172
    %v194 = vmul.f32 %v153, %v164
    %v195 = vmul.f32 %v153, %v168
    %v196 = vmul.f32 %v153, %v172
    %v197 = vmul.f32 %v158, %v164
    %v198 = vmul.f32 %v158, %v168
    %v199 = vmul.f32 %v158, %v172
    %v201 = vlaneseq
    %v202 = vshrl.u32 %v201, 7
    %v203 = vsub.s32 0, %v202
    %v204 = vrot.slane %v110, %v203
    %v205 = vlaneseq
    %v206 = vshrl.u32 %v205, 7
    %v207 = vsub.s32 1, %v206
    %v208 = vrot.slane %v110, %v207
    %v209 = vlaneseq
    %v210 = vshrl.u32 %v209, 7
    %v211 = vsub.s32 2, %v210
    %v212 = vrot.slane %v110, %v211
    %v216 = vadd.f32 %v176, %v204
    %v217 = vadd.f32 %v177, %v208
    %v218 = vadd.f32 %v178, %v212
    %v219 = vadd.f32 %v179, %v204
    %v220 = vadd.f32 %v180, %v208
    %v221 = vadd.f32 %v181, %v212
    %v222 = vadd.f32 %v182, %v204
    %v223 = vadd.f32 %v183, %v208
    %v224 = vadd.f32 %v184, %v212
    %v225 = vadd.f32 %v185, %v204
    %v226 = vadd.f32 %v186, %v208
    %v227 = vadd.f32 %v187, %v212
    %v228 = vadd.f32 %v188, %v204
    %v229 = vadd.f32 %v189, %v208
    %v230 = vadd.f32 %v190, %v212
    %v231 = vadd.f32 %v191, %v204
    %v232 = vadd.f32 %v192, %v208
    %v233 = vadd.f32 %v193, %v212
    %v234 = vadd.f32 %v194, %v204
    %v235 = vadd.f32 %v195, %v208
    %v236 = vadd.f32 %v196, %v212
    %v237 = vadd.f32 %v197, %v204
    %v238 = vadd.f32 %v198, %v208
    %v239 = vadd.f32 %v199, %v212
    %v240 = vld [vmem:[%s1] sm:$0xff]
    %241 = vmatprep.subr.mxu0 %v63
    %242 = vmatpush1.msra.mxu0 %v62
    %243 = vmatprep.subr.mxu0 %v66
    %244 = vmatpush1.msra.mxu0 %v65
    %245 = vmatprep.subr.mxu0 %v69
    %246 = vmatpush1.msra.mxu0 %v68
    %247 = vmatprep.subr.mxu0 %v72
    %248 = vmatpush1.msra.mxu0 %v71
    %249 = vmatprep.subr.mxu0 %v75
    %250 = vmatpush1.msra.mxu0 %v74
    %251 = vmatprep.subr.mxu0 %v78
    %252 = vmatpush1.msra.mxu0 %v77
    %253 = vmatprep.subr.mxu0 %v81
    %254 = vmatpush1.msra.mxu0 %v80
    %255 = vmatprep.subr.mxu0 %v84
    %256 = vmatpush1.msra.mxu0 %v83
    %257 = vmatprep.subr.mxu0 %v87
    %258 = vmatpush1.msra.mxu0 %v86
    %259 = vmatprep.subr.mxu0 %v90
    %260 = vmatpush1.msra.mxu0 %v89
    %261 = vmatprep.subr.mxu0 %v93
    %262 = vmatpush1.msra.mxu0 %v92
    %263 = vmatprep.subr.mxu0 %v96
    %264 = vmatpush1.msra.mxu0 %v95
    %265 = vmatprep.subr.mxu0 %v99
    %266 = vmatpush1.msra.mxu0 %v98
    %267 = vmatprep.subr.mxu0 %v102
    %268 = vmatpush1.msra.mxu0 %v101
    %269 = vmatprep.subr.mxu0 %v105
    %270 = vmatpush1.msra.mxu0 %v104
    %271 = vmatprep.subr.mxu0 %v108
    %272 = vmatpush1.msra.mxu0 %v107
    %273 = vmatprep.subr.mxu0 0.0
    %274 = vmatpush1.msra.mxu0 0.0
    %275 = vmatprep.subr.mxu0 0.0
    %276 = vmatpush1.msra.mxu0 0.0
    %277 = vmatprep.subr.mxu0 0.0
    %278 = vmatpush1.msra.mxu0 0.0
    %279 = vmatprep.subr.mxu0 0.0
    %280 = vmatpush1.msra.mxu0 0.0
    %281 = vmatprep.subr.mxu0 0.0
    %282 = vmatpush1.msra.mxu0 0.0
    %283 = vmatprep.subr.mxu0 0.0
    %284 = vmatpush1.msra.mxu0 0.0
    %285 = vmatprep.subr.mxu0 0.0
    %286 = vmatpush1.msra.mxu0 0.0
    %287 = vmatprep.subr.mxu0 0.0
    %288 = vmatpush1.msra.mxu0 0.0
    %289 = vmatprep.subr.mxu0 0.0
    %290 = vmatpush1.msra.mxu0 0.0
    %291 = vmatprep.subr.mxu0 0.0
    %292 = vmatpush1.msra.mxu0 0.0
    %293 = vmatprep.subr.mxu0 0.0
    %294 = vmatpush1.msra.mxu0 0.0
    %295 = vmatprep.subr.mxu0 0.0
    %296 = vmatpush1.msra.mxu0 0.0
    %297 = vmatprep.subr.mxu0 0.0
    %298 = vmatpush1.msra.mxu0 0.0
    %299 = vmatprep.subr.mxu0 0.0
    %300 = vmatpush1.msra.mxu0 0.0
    %301 = vmatprep.subr.mxu0 0.0
    %302 = vmatpush1.msra.mxu0 0.0
    %303 = vmatprep.subr.mxu0 0.0
    %304 = vmatpush1.msra.mxu0 0.0
    %305 = vmatprep.mubr.f32.mxu0 0.0
    %306 = vmatmul.mubr.f32.gmra.mrb[0].mxu0 %v240
    %v307 = vpop.f32.mrb[0].mxu0
    %v308 = vadd.f32 0.0, %v307
    %v309 = vpop.f32.mrb[0].mxu0
    %v310 = vadd.f32 0.0, %v309
    %311 = vdwg.mxu0
    %312 = vmatprep.subr.mxu0 0.0
    %313 = vmatpush1.msra.mxu0 %v64
    %314 = vmatprep.subr.mxu0 0.0
    %315 = vmatpush1.msra.mxu0 %v67
    %316 = vmatprep.subr.mxu0 0.0
    %317 = vmatpush1.msra.mxu0 %v70
    %318 = vmatprep.subr.mxu0 0.0
    %319 = vmatpush1.msra.mxu0 %v73
    %320 = vmatprep.subr.mxu0 0.0
    %321 = vmatpush1.msra.mxu0 %v76
    %322 = vmatprep.subr.mxu0 0.0
    %323 = vmatpush1.msra.mxu0 %v79
    %324 = vmatprep.subr.mxu0 0.0
    %325 = vmatpush1.msra.mxu0 %v82
    %326 = vmatprep.subr.mxu0 0.0
    %327 = vmatpush1.msra.mxu0 %v85
    %328 = vmatprep.subr.mxu0 0.0
    %329 = vmatpush1.msra.mxu0 %v88
    %330 = vmatprep.subr.mxu0 0.0
    %331 = vmatpush1.msra.mxu0 %v91
    %332 = vmatprep.subr.mxu0 0.0
    %333 = vmatpush1.msra.mxu0 %v94
    %334 = vmatprep.subr.mxu0 0.0
    %335 = vmatpush1.msra.mxu0 %v97
    %336 = vmatprep.subr.mxu0 0.0
    %337 = vmatpush1.msra.mxu0 %v100
    %338 = vmatprep.subr.mxu0 0.0
    %339 = vmatpush1.msra.mxu0 %v103
    %340 = vmatprep.subr.mxu0 0.0
    %341 = vmatpush1.msra.mxu0 %v106
    %342 = vmatprep.subr.mxu0 0.0
    %343 = vmatpush1.msra.mxu0 %v109
    %344 = vmatprep.subr.mxu0 0.0
    %345 = vmatpush1.msra.mxu0 0.0
    %346 = vmatprep.subr.mxu0 0.0
    %347 = vmatpush1.msra.mxu0 0.0
    %348 = vmatprep.subr.mxu0 0.0
    %349 = vmatpush1.msra.mxu0 0.0
    %350 = vmatprep.subr.mxu0 0.0
    %351 = vmatpush1.msra.mxu0 0.0
    %352 = vmatprep.subr.mxu0 0.0
    %353 = vmatpush1.msra.mxu0 0.0
    %354 = vmatprep.subr.mxu0 0.0
    %355 = vmatpush1.msra.mxu0 0.0
    %356 = vmatprep.subr.mxu0 0.0
    %357 = vmatpush1.msra.mxu0 0.0
    %358 = vmatprep.subr.mxu0 0.0
    %359 = vmatpush1.msra.mxu0 0.0
    %360 = vmatprep.subr.mxu0 0.0
    %361 = vmatpush1.msra.mxu0 0.0
    %362 = vmatprep.subr.mxu0 0.0
    %363 = vmatpush1.msra.mxu0 0.0
    %364 = vmatprep.subr.mxu0 0.0
    %365 = vmatpush1.msra.mxu0 0.0
    %366 = vmatprep.subr.mxu0 0.0
    %367 = vmatpush1.msra.mxu0 0.0
    %368 = vmatprep.subr.mxu0 0.0
    %369 = vmatpush1.msra.mxu0 0.0
    %370 = vmatprep.subr.mxu0 0.0
    %371 = vmatpush1.msra.mxu0 0.0
    %372 = vmatprep.subr.mxu0 0.0
    %373 = vmatpush1.msra.mxu0 0.0
    %374 = vmatprep.subr.mxu0 0.0
    %375 = vmatpush1.msra.mxu0 0.0
    %376 = vmatprep.mubr.f32.mxu0 0.0
    %377 = vmatmul.mubr.f32.gmra.mrb[0].mxu0 %v240
    %v378 = vpop.f32.mrb[0].mxu0
    %v379 = vadd.f32 0.0, %v378
    %v380 = vpop.f32.mrb[0].mxu0
    %381 = vdwg.mxu0
    %v382 = vadd.f32 %v216, %v308
    %v383 = vmul.f32 %v382, 0.5
    %v384 = vtanh.pop %v383
    %v385 = vadd.f32 %v384, 1.0
    %v386 = vmul.f32 %v385, 0.5
    %v387 = vadd.f32 %v217, %v310
    %v388 = vmul.f32 %v387, 0.5
    %v389 = vtanh.pop %v388
    %v390 = vadd.f32 %v389, 1.0
    %v391 = vmul.f32 %v390, 0.5
    %v393 = vlaneseq
    %v394 = vshrl.u32 %v393, 7
    %v395 = vsub.s32 0, %v394
    %v396 = vrot.slane %v111, %v395
    %v398 = vadd.f32 %v379, %v396
    %v399 = vmul.f32 %v386, %v398
    %v400 = vadd.f32 %v218, %v399
    %v401 = vtanh.pop %v400
    %v402 = vsub.f32 1.0, %v391
    %v403 = vmul.f32 %v402, %v401
    %v404 = vmul.f32 %v391, %v240
    %v405 = vadd.f32 %v403, %v404
    %406 = vmatprep.subr.mxu0 %v63
    %407 = vmatpush1.msra.mxu0 %v62
    %408 = vmatprep.subr.mxu0 %v66
    %409 = vmatpush1.msra.mxu0 %v65
    %410 = vmatprep.subr.mxu0 %v69
    %411 = vmatpush1.msra.mxu0 %v68
    %412 = vmatprep.subr.mxu0 %v72
    %413 = vmatpush1.msra.mxu0 %v71
    %414 = vmatprep.subr.mxu0 %v75
    %415 = vmatpush1.msra.mxu0 %v74
    %416 = vmatprep.subr.mxu0 %v78
    %417 = vmatpush1.msra.mxu0 %v77
    %418 = vmatprep.subr.mxu0 %v81
    %419 = vmatpush1.msra.mxu0 %v80
    %420 = vmatprep.subr.mxu0 %v84
    %421 = vmatpush1.msra.mxu0 %v83
    %422 = vmatprep.subr.mxu0 %v87
    %423 = vmatpush1.msra.mxu0 %v86
    %424 = vmatprep.subr.mxu0 %v90
    %425 = vmatpush1.msra.mxu0 %v89
    %426 = vmatprep.subr.mxu0 %v93
    %427 = vmatpush1.msra.mxu0 %v92
    %428 = vmatprep.subr.mxu0 %v96
    %429 = vmatpush1.msra.mxu0 %v95
    %430 = vmatprep.subr.mxu0 %v99
    %431 = vmatpush1.msra.mxu0 %v98
    %432 = vmatprep.subr.mxu0 %v102
    %433 = vmatpush1.msra.mxu0 %v101
    %434 = vmatprep.subr.mxu0 %v105
    %435 = vmatpush1.msra.mxu0 %v104
    %436 = vmatprep.subr.mxu0 %v108
    %437 = vmatpush1.msra.mxu0 %v107
    %438 = vmatprep.subr.mxu0 0.0
    %439 = vmatpush1.msra.mxu0 0.0
    %440 = vmatprep.subr.mxu0 0.0
    %441 = vmatpush1.msra.mxu0 0.0
    %442 = vmatprep.subr.mxu0 0.0
    %443 = vmatpush1.msra.mxu0 0.0
    %444 = vmatprep.subr.mxu0 0.0
    %445 = vmatpush1.msra.mxu0 0.0
    %446 = vmatprep.subr.mxu0 0.0
    %447 = vmatpush1.msra.mxu0 0.0
    %448 = vmatprep.subr.mxu0 0.0
    %449 = vmatpush1.msra.mxu0 0.0
    %450 = vmatprep.subr.mxu0 0.0
    %451 = vmatpush1.msra.mxu0 0.0
    %452 = vmatprep.subr.mxu0 0.0
    %453 = vmatpush1.msra.mxu0 0.0
    %454 = vmatprep.subr.mxu0 0.0
    %455 = vmatpush1.msra.mxu0 0.0
    %456 = vmatprep.subr.mxu0 0.0
    %457 = vmatpush1.msra.mxu0 0.0
    %458 = vmatprep.subr.mxu0 0.0
    %459 = vmatpush1.msra.mxu0 0.0
    %460 = vmatprep.subr.mxu0 0.0
    %461 = vmatpush1.msra.mxu0 0.0
    %462 = vmatprep.subr.mxu0 0.0
    %463 = vmatpush1.msra.mxu0 0.0
    %464 = vmatprep.subr.mxu0 0.0
    %465 = vmatpush1.msra.mxu0 0.0
    %466 = vmatprep.subr.mxu0 0.0
    %467 = vmatpush1.msra.mxu0 0.0
    %468 = vmatprep.subr.mxu0 0.0
    %469 = vmatpush1.msra.mxu0 0.0
    %470 = vmatprep.mubr.f32.mxu0 0.0
    %471 = vmatmul.mubr.f32.gmra.mrb[0].mxu0 %v405
    %v472 = vpop.f32.mrb[0].mxu0
    %v473 = vadd.f32 0.0, %v472
    %v474 = vpop.f32.mrb[0].mxu0
    %v475 = vadd.f32 0.0, %v474
    %476 = vdwg.mxu0
    %477 = vmatprep.subr.mxu0 0.0
    %478 = vmatpush1.msra.mxu0 %v64
    %479 = vmatprep.subr.mxu0 0.0
    %480 = vmatpush1.msra.mxu0 %v67
    %481 = vmatprep.subr.mxu0 0.0
    %482 = vmatpush1.msra.mxu0 %v70
    %483 = vmatprep.subr.mxu0 0.0
    %484 = vmatpush1.msra.mxu0 %v73
    %485 = vmatprep.subr.mxu0 0.0
    %486 = vmatpush1.msra.mxu0 %v76
    %487 = vmatprep.subr.mxu0 0.0
    %488 = vmatpush1.msra.mxu0 %v79
    %489 = vmatprep.subr.mxu0 0.0
    %490 = vmatpush1.msra.mxu0 %v82
    %491 = vmatprep.subr.mxu0 0.0
    %492 = vmatpush1.msra.mxu0 %v85
    %493 = vmatprep.subr.mxu0 0.0
    %494 = vmatpush1.msra.mxu0 %v88
    %495 = vmatprep.subr.mxu0 0.0
    %496 = vmatpush1.msra.mxu0 %v91
    %497 = vmatprep.subr.mxu0 0.0
    %498 = vmatpush1.msra.mxu0 %v94
    %499 = vmatprep.subr.mxu0 0.0
    %500 = vmatpush1.msra.mxu0 %v97
    %501 = vmatprep.subr.mxu0 0.0
    %502 = vmatpush1.msra.mxu0 %v100
    %503 = vmatprep.subr.mxu0 0.0
    %504 = vmatpush1.msra.mxu0 %v103
    %505 = vmatprep.subr.mxu0 0.0
    %506 = vmatpush1.msra.mxu0 %v106
    %507 = vmatprep.subr.mxu0 0.0
    %508 = vmatpush1.msra.mxu0 %v109
    %509 = vmatprep.subr.mxu0 0.0
    %510 = vmatpush1.msra.mxu0 0.0
    %511 = vmatprep.subr.mxu0 0.0
    %512 = vmatpush1.msra.mxu0 0.0
    %513 = vmatprep.subr.mxu0 0.0
    %514 = vmatpush1.msra.mxu0 0.0
    %515 = vmatprep.subr.mxu0 0.0
    %516 = vmatpush1.msra.mxu0 0.0
    %517 = vmatprep.subr.mxu0 0.0
    %518 = vmatpush1.msra.mxu0 0.0
    %519 = vmatprep.subr.mxu0 0.0
    %520 = vmatpush1.msra.mxu0 0.0
    %521 = vmatprep.subr.mxu0 0.0
    %522 = vmatpush1.msra.mxu0 0.0
    %523 = vmatprep.subr.mxu0 0.0
    %524 = vmatpush1.msra.mxu0 0.0
    %525 = vmatprep.subr.mxu0 0.0
    %526 = vmatpush1.msra.mxu0 0.0
    %527 = vmatprep.subr.mxu0 0.0
    %528 = vmatpush1.msra.mxu0 0.0
    %529 = vmatprep.subr.mxu0 0.0
    %530 = vmatpush1.msra.mxu0 0.0
    %531 = vmatprep.subr.mxu0 0.0
    %532 = vmatpush1.msra.mxu0 0.0
    %533 = vmatprep.subr.mxu0 0.0
    %534 = vmatpush1.msra.mxu0 0.0
    %535 = vmatprep.subr.mxu0 0.0
    %536 = vmatpush1.msra.mxu0 0.0
    %537 = vmatprep.subr.mxu0 0.0
    %538 = vmatpush1.msra.mxu0 0.0
    %539 = vmatprep.subr.mxu0 0.0
    %540 = vmatpush1.msra.mxu0 0.0
    %541 = vmatprep.mubr.f32.mxu0 0.0
    %542 = vmatmul.mubr.f32.gmra.mrb[0].mxu0 %v405
    %v543 = vpop.f32.mrb[0].mxu0
    %v544 = vadd.f32 0.0, %v543
    %v545 = vpop.f32.mrb[0].mxu0
    %546 = vdwg.mxu0
    %v547 = vadd.f32 %v219, %v473
    %v548 = vmul.f32 %v547, 0.5
    %v549 = vtanh.pop %v548
    %v550 = vadd.f32 %v549, 1.0
    %v551 = vmul.f32 %v550, 0.5
    %v552 = vadd.f32 %v220, %v475
    %v553 = vmul.f32 %v552, 0.5
    %v554 = vtanh.pop %v553
    %v555 = vadd.f32 %v554, 1.0
    %v556 = vmul.f32 %v555, 0.5
    %v557 = vadd.f32 %v544, %v396
    %v558 = vmul.f32 %v551, %v557
    %v559 = vadd.f32 %v221, %v558
    %v560 = vtanh.pop %v559
    %v561 = vsub.f32 1.0, %v556
    %v562 = vmul.f32 %v561, %v560
    %v563 = vmul.f32 %v556, %v405
    %v564 = vadd.f32 %v562, %v563
    %565 = vmatprep.subr.mxu0 %v63
    %566 = vmatpush1.msra.mxu0 %v62
    %567 = vmatprep.subr.mxu0 %v66
    %568 = vmatpush1.msra.mxu0 %v65
    %569 = vmatprep.subr.mxu0 %v69
    %570 = vmatpush1.msra.mxu0 %v68
    %571 = vmatprep.subr.mxu0 %v72
    %572 = vmatpush1.msra.mxu0 %v71
    %573 = vmatprep.subr.mxu0 %v75
    %574 = vmatpush1.msra.mxu0 %v74
    %575 = vmatprep.subr.mxu0 %v78
    %576 = vmatpush1.msra.mxu0 %v77
    %577 = vmatprep.subr.mxu0 %v81
    %578 = vmatpush1.msra.mxu0 %v80
    %579 = vmatprep.subr.mxu0 %v84
    %580 = vmatpush1.msra.mxu0 %v83
    %581 = vmatprep.subr.mxu0 %v87
    %582 = vmatpush1.msra.mxu0 %v86
    %583 = vmatprep.subr.mxu0 %v90
    %584 = vmatpush1.msra.mxu0 %v89
    %585 = vmatprep.subr.mxu0 %v93
    %586 = vmatpush1.msra.mxu0 %v92
    %587 = vmatprep.subr.mxu0 %v96
    %588 = vmatpush1.msra.mxu0 %v95
    %589 = vmatprep.subr.mxu0 %v99
    %590 = vmatpush1.msra.mxu0 %v98
    %591 = vmatprep.subr.mxu0 %v102
    %592 = vmatpush1.msra.mxu0 %v101
    %593 = vmatprep.subr.mxu0 %v105
    %594 = vmatpush1.msra.mxu0 %v104
    %595 = vmatprep.subr.mxu0 %v108
    %596 = vmatpush1.msra.mxu0 %v107
    %597 = vmatprep.subr.mxu0 0.0
    %598 = vmatpush1.msra.mxu0 0.0
    %599 = vmatprep.subr.mxu0 0.0
    %600 = vmatpush1.msra.mxu0 0.0
    %601 = vmatprep.subr.mxu0 0.0
    %602 = vmatpush1.msra.mxu0 0.0
    %603 = vmatprep.subr.mxu0 0.0
    %604 = vmatpush1.msra.mxu0 0.0
    %605 = vmatprep.subr.mxu0 0.0
    %606 = vmatpush1.msra.mxu0 0.0
    %607 = vmatprep.subr.mxu0 0.0
    %608 = vmatpush1.msra.mxu0 0.0
    %609 = vmatprep.subr.mxu0 0.0
    %610 = vmatpush1.msra.mxu0 0.0
    %611 = vmatprep.subr.mxu0 0.0
    %612 = vmatpush1.msra.mxu0 0.0
    %613 = vmatprep.subr.mxu0 0.0
    %614 = vmatpush1.msra.mxu0 0.0
    %615 = vmatprep.subr.mxu0 0.0
    %616 = vmatpush1.msra.mxu0 0.0
    %617 = vmatprep.subr.mxu0 0.0
    %618 = vmatpush1.msra.mxu0 0.0
    %619 = vmatprep.subr.mxu0 0.0
    %620 = vmatpush1.msra.mxu0 0.0
    %621 = vmatprep.subr.mxu0 0.0
    %622 = vmatpush1.msra.mxu0 0.0
    %623 = vmatprep.subr.mxu0 0.0
    %624 = vmatpush1.msra.mxu0 0.0
    %625 = vmatprep.subr.mxu0 0.0
    %626 = vmatpush1.msra.mxu0 0.0
    %627 = vmatprep.subr.mxu0 0.0
    %628 = vmatpush1.msra.mxu0 0.0
    %629 = vmatprep.mubr.f32.mxu0 0.0
    %630 = vmatmul.mubr.f32.gmra.mrb[0].mxu0 %v564
    %v631 = vpop.f32.mrb[0].mxu0
    %v632 = vadd.f32 0.0, %v631
    %v633 = vpop.f32.mrb[0].mxu0
    %v634 = vadd.f32 0.0, %v633
    %635 = vdwg.mxu0
    %636 = vmatprep.subr.mxu0 0.0
    %637 = vmatpush1.msra.mxu0 %v64
    %638 = vmatprep.subr.mxu0 0.0
    %639 = vmatpush1.msra.mxu0 %v67
    %640 = vmatprep.subr.mxu0 0.0
    %641 = vmatpush1.msra.mxu0 %v70
    %642 = vmatprep.subr.mxu0 0.0
    %643 = vmatpush1.msra.mxu0 %v73
    %644 = vmatprep.subr.mxu0 0.0
    %645 = vmatpush1.msra.mxu0 %v76
    %646 = vmatprep.subr.mxu0 0.0
    %647 = vmatpush1.msra.mxu0 %v79
    %648 = vmatprep.subr.mxu0 0.0
    %649 = vmatpush1.msra.mxu0 %v82
    %650 = vmatprep.subr.mxu0 0.0
    %651 = vmatpush1.msra.mxu0 %v85
    %652 = vmatprep.subr.mxu0 0.0
    %653 = vmatpush1.msra.mxu0 %v88
    %654 = vmatprep.subr.mxu0 0.0
    %655 = vmatpush1.msra.mxu0 %v91
    %656 = vmatprep.subr.mxu0 0.0
    %657 = vmatpush1.msra.mxu0 %v94
    %658 = vmatprep.subr.mxu0 0.0
    %659 = vmatpush1.msra.mxu0 %v97
    %660 = vmatprep.subr.mxu0 0.0
    %661 = vmatpush1.msra.mxu0 %v100
    %662 = vmatprep.subr.mxu0 0.0
    %663 = vmatpush1.msra.mxu0 %v103
    %664 = vmatprep.subr.mxu0 0.0
    %665 = vmatpush1.msra.mxu0 %v106
    %666 = vmatprep.subr.mxu0 0.0
    %667 = vmatpush1.msra.mxu0 %v109
    %668 = vmatprep.subr.mxu0 0.0
    %669 = vmatpush1.msra.mxu0 0.0
    %670 = vmatprep.subr.mxu0 0.0
    %671 = vmatpush1.msra.mxu0 0.0
    %672 = vmatprep.subr.mxu0 0.0
    %673 = vmatpush1.msra.mxu0 0.0
    %674 = vmatprep.subr.mxu0 0.0
    %675 = vmatpush1.msra.mxu0 0.0
    %676 = vmatprep.subr.mxu0 0.0
    %677 = vmatpush1.msra.mxu0 0.0
    %678 = vmatprep.subr.mxu0 0.0
    %679 = vmatpush1.msra.mxu0 0.0
    %680 = vmatprep.subr.mxu0 0.0
    %681 = vmatpush1.msra.mxu0 0.0
    %682 = vmatprep.subr.mxu0 0.0
    %683 = vmatpush1.msra.mxu0 0.0
    %684 = vmatprep.subr.mxu0 0.0
    %685 = vmatpush1.msra.mxu0 0.0
    %686 = vmatprep.subr.mxu0 0.0
    %687 = vmatpush1.msra.mxu0 0.0
    %688 = vmatprep.subr.mxu0 0.0
    %689 = vmatpush1.msra.mxu0 0.0
    %690 = vmatprep.subr.mxu0 0.0
    %691 = vmatpush1.msra.mxu0 0.0
    %692 = vmatprep.subr.mxu0 0.0
    %693 = vmatpush1.msra.mxu0 0.0
    %694 = vmatprep.subr.mxu0 0.0
    %695 = vmatpush1.msra.mxu0 0.0
    %696 = vmatprep.subr.mxu0 0.0
    %697 = vmatpush1.msra.mxu0 0.0
    %698 = vmatprep.subr.mxu0 0.0
    %699 = vmatpush1.msra.mxu0 0.0
    %700 = vmatprep.mubr.f32.mxu0 0.0
    %701 = vmatmul.mubr.f32.gmra.mrb[0].mxu0 %v564
    %v702 = vpop.f32.mrb[0].mxu0
    %v703 = vadd.f32 0.0, %v702
    %v704 = vpop.f32.mrb[0].mxu0
    %705 = vdwg.mxu0
    %v706 = vadd.f32 %v222, %v632
    %v707 = vmul.f32 %v706, 0.5
    %v708 = vtanh.pop %v707
    %v709 = vadd.f32 %v708, 1.0
    %v710 = vmul.f32 %v709, 0.5
    %v711 = vadd.f32 %v223, %v634
    %v712 = vmul.f32 %v711, 0.5
    %v713 = vtanh.pop %v712
    %v714 = vadd.f32 %v713, 1.0
    %v715 = vmul.f32 %v714, 0.5
    %v716 = vadd.f32 %v703, %v396
    %v717 = vmul.f32 %v710, %v716
    %v718 = vadd.f32 %v224, %v717
    %v719 = vtanh.pop %v718
    %v720 = vsub.f32 1.0, %v715
    %v721 = vmul.f32 %v720, %v719
    %v722 = vmul.f32 %v715, %v564
    %v723 = vadd.f32 %v721, %v722
    %724 = vmatprep.subr.mxu0 %v63
    %725 = vmatpush1.msra.mxu0 %v62
    %726 = vmatprep.subr.mxu0 %v66
    %727 = vmatpush1.msra.mxu0 %v65
    %728 = vmatprep.subr.mxu0 %v69
    %729 = vmatpush1.msra.mxu0 %v68
    %730 = vmatprep.subr.mxu0 %v72
    %731 = vmatpush1.msra.mxu0 %v71
    %732 = vmatprep.subr.mxu0 %v75
    %733 = vmatpush1.msra.mxu0 %v74
    %734 = vmatprep.subr.mxu0 %v78
    %735 = vmatpush1.msra.mxu0 %v77
    %736 = vmatprep.subr.mxu0 %v81
    %737 = vmatpush1.msra.mxu0 %v80
    %738 = vmatprep.subr.mxu0 %v84
    %739 = vmatpush1.msra.mxu0 %v83
    %740 = vmatprep.subr.mxu0 %v87
    %741 = vmatpush1.msra.mxu0 %v86
    %742 = vmatprep.subr.mxu0 %v90
    %743 = vmatpush1.msra.mxu0 %v89
    %744 = vmatprep.subr.mxu0 %v93
    %745 = vmatpush1.msra.mxu0 %v92
    %746 = vmatprep.subr.mxu0 %v96
    %747 = vmatpush1.msra.mxu0 %v95
    %748 = vmatprep.subr.mxu0 %v99
    %749 = vmatpush1.msra.mxu0 %v98
    %750 = vmatprep.subr.mxu0 %v102
    %751 = vmatpush1.msra.mxu0 %v101
    %752 = vmatprep.subr.mxu0 %v105
    %753 = vmatpush1.msra.mxu0 %v104
    %754 = vmatprep.subr.mxu0 %v108
    %755 = vmatpush1.msra.mxu0 %v107
    %756 = vmatprep.subr.mxu0 0.0
    %757 = vmatpush1.msra.mxu0 0.0
    %758 = vmatprep.subr.mxu0 0.0
    %759 = vmatpush1.msra.mxu0 0.0
    %760 = vmatprep.subr.mxu0 0.0
    %761 = vmatpush1.msra.mxu0 0.0
    %762 = vmatprep.subr.mxu0 0.0
    %763 = vmatpush1.msra.mxu0 0.0
    %764 = vmatprep.subr.mxu0 0.0
    %765 = vmatpush1.msra.mxu0 0.0
    %766 = vmatprep.subr.mxu0 0.0
    %767 = vmatpush1.msra.mxu0 0.0
    %768 = vmatprep.subr.mxu0 0.0
    %769 = vmatpush1.msra.mxu0 0.0
    %770 = vmatprep.subr.mxu0 0.0
    %771 = vmatpush1.msra.mxu0 0.0
    %772 = vmatprep.subr.mxu0 0.0
    %773 = vmatpush1.msra.mxu0 0.0
    %774 = vmatprep.subr.mxu0 0.0
    %775 = vmatpush1.msra.mxu0 0.0
    %776 = vmatprep.subr.mxu0 0.0
    %777 = vmatpush1.msra.mxu0 0.0
    %778 = vmatprep.subr.mxu0 0.0
    %779 = vmatpush1.msra.mxu0 0.0
    %780 = vmatprep.subr.mxu0 0.0
    %781 = vmatpush1.msra.mxu0 0.0
    %782 = vmatprep.subr.mxu0 0.0
    %783 = vmatpush1.msra.mxu0 0.0
    %784 = vmatprep.subr.mxu0 0.0
    %785 = vmatpush1.msra.mxu0 0.0
    %786 = vmatprep.subr.mxu0 0.0
    %787 = vmatpush1.msra.mxu0 0.0
    %788 = vmatprep.mubr.f32.mxu0 0.0
    %789 = vmatmul.mubr.f32.gmra.mrb[0].mxu0 %v723
    %v790 = vpop.f32.mrb[0].mxu0
    %v791 = vadd.f32 0.0, %v790
    %v792 = vpop.f32.mrb[0].mxu0
    %v793 = vadd.f32 0.0, %v792
    %794 = vdwg.mxu0
    %795 = vmatprep.subr.mxu0 0.0
    %796 = vmatpush1.msra.mxu0 %v64
    %797 = vmatprep.subr.mxu0 0.0
    %798 = vmatpush1.msra.mxu0 %v67
    %799 = vmatprep.subr.mxu0 0.0
    %800 = vmatpush1.msra.mxu0 %v70
    %801 = vmatprep.subr.mxu0 0.0
    %802 = vmatpush1.msra.mxu0 %v73
    %803 = vmatprep.subr.mxu0 0.0
    %804 = vmatpush1.msra.mxu0 %v76
    %805 = vmatprep.subr.mxu0 0.0
    %806 = vmatpush1.msra.mxu0 %v79
    %807 = vmatprep.subr.mxu0 0.0
    %808 = vmatpush1.msra.mxu0 %v82
    %809 = vmatprep.subr.mxu0 0.0
    %810 = vmatpush1.msra.mxu0 %v85
    %811 = vmatprep.subr.mxu0 0.0
    %812 = vmatpush1.msra.mxu0 %v88
    %813 = vmatprep.subr.mxu0 0.0
    %814 = vmatpush1.msra.mxu0 %v91
    %815 = vmatprep.subr.mxu0 0.0
    %816 = vmatpush1.msra.mxu0 %v94
    %817 = vmatprep.subr.mxu0 0.0
    %818 = vmatpush1.msra.mxu0 %v97
    %819 = vmatprep.subr.mxu0 0.0
    %820 = vmatpush1.msra.mxu0 %v100
    %821 = vmatprep.subr.mxu0 0.0
    %822 = vmatpush1.msra.mxu0 %v103
    %823 = vmatprep.subr.mxu0 0.0
    %824 = vmatpush1.msra.mxu0 %v106
    %825 = vmatprep.subr.mxu0 0.0
    %826 = vmatpush1.msra.mxu0 %v109
    %827 = vmatprep.subr.mxu0 0.0
    %828 = vmatpush1.msra.mxu0 0.0
    %829 = vmatprep.subr.mxu0 0.0
    %830 = vmatpush1.msra.mxu0 0.0
    %831 = vmatprep.subr.mxu0 0.0
    %832 = vmatpush1.msra.mxu0 0.0
    %833 = vmatprep.subr.mxu0 0.0
    %834 = vmatpush1.msra.mxu0 0.0
    %835 = vmatprep.subr.mxu0 0.0
    %836 = vmatpush1.msra.mxu0 0.0
    %837 = vmatprep.subr.mxu0 0.0
    %838 = vmatpush1.msra.mxu0 0.0
    %839 = vmatprep.subr.mxu0 0.0
    %840 = vmatpush1.msra.mxu0 0.0
    %841 = vmatprep.subr.mxu0 0.0
    %842 = vmatpush1.msra.mxu0 0.0
    %843 = vmatprep.subr.mxu0 0.0
    %844 = vmatpush1.msra.mxu0 0.0
    %845 = vmatprep.subr.mxu0 0.0
    %846 = vmatpush1.msra.mxu0 0.0
    %847 = vmatprep.subr.mxu0 0.0
    %848 = vmatpush1.msra.mxu0 0.0
    %849 = vmatprep.subr.mxu0 0.0
    %850 = vmatpush1.msra.mxu0 0.0
    %851 = vmatprep.subr.mxu0 0.0
    %852 = vmatpush1.msra.mxu0 0.0
    %853 = vmatprep.subr.mxu0 0.0
    %854 = vmatpush1.msra.mxu0 0.0
    %855 = vmatprep.subr.mxu0 0.0
    %856 = vmatpush1.msra.mxu0 0.0
    %857 = vmatprep.subr.mxu0 0.0
    %858 = vmatpush1.msra.mxu0 0.0
    %859 = vmatprep.mubr.f32.mxu0 0.0
    %860 = vmatmul.mubr.f32.gmra.mrb[0].mxu0 %v723
    %v861 = vpop.f32.mrb[0].mxu0
    %v862 = vadd.f32 0.0, %v861
    %v863 = vpop.f32.mrb[0].mxu0
    %864 = vdwg.mxu0
    %v865 = vadd.f32 %v225, %v791
    %v866 = vmul.f32 %v865, 0.5
    %v867 = vtanh.pop %v866
    %v868 = vadd.f32 %v867, 1.0
    %v869 = vmul.f32 %v868, 0.5
    %v870 = vadd.f32 %v226, %v793
    %v871 = vmul.f32 %v870, 0.5
    %v872 = vtanh.pop %v871
    %v873 = vadd.f32 %v872, 1.0
    %v874 = vmul.f32 %v873, 0.5
    %v875 = vadd.f32 %v862, %v396
    %v876 = vmul.f32 %v869, %v875
    %v877 = vadd.f32 %v227, %v876
    %v878 = vtanh.pop %v877
    %v879 = vsub.f32 1.0, %v874
    %v880 = vmul.f32 %v879, %v878
    %v881 = vmul.f32 %v874, %v723
    %v882 = vadd.f32 %v880, %v881
    %883 = vmatprep.subr.mxu0 %v63
    %884 = vmatpush1.msra.mxu0 %v62
    %885 = vmatprep.subr.mxu0 %v66
    %886 = vmatpush1.msra.mxu0 %v65
    %887 = vmatprep.subr.mxu0 %v69
    %888 = vmatpush1.msra.mxu0 %v68
    %889 = vmatprep.subr.mxu0 %v72
    %890 = vmatpush1.msra.mxu0 %v71
    %891 = vmatprep.subr.mxu0 %v75
    %892 = vmatpush1.msra.mxu0 %v74
    %893 = vmatprep.subr.mxu0 %v78
    %894 = vmatpush1.msra.mxu0 %v77
    %895 = vmatprep.subr.mxu0 %v81
    %896 = vmatpush1.msra.mxu0 %v80
    %897 = vmatprep.subr.mxu0 %v84
    %898 = vmatpush1.msra.mxu0 %v83
    %899 = vmatprep.subr.mxu0 %v87
    %900 = vmatpush1.msra.mxu0 %v86
    %901 = vmatprep.subr.mxu0 %v90
    %902 = vmatpush1.msra.mxu0 %v89
    %903 = vmatprep.subr.mxu0 %v93
    %904 = vmatpush1.msra.mxu0 %v92
    %905 = vmatprep.subr.mxu0 %v96
    %906 = vmatpush1.msra.mxu0 %v95
    %907 = vmatprep.subr.mxu0 %v99
    %908 = vmatpush1.msra.mxu0 %v98
    %909 = vmatprep.subr.mxu0 %v102
    %910 = vmatpush1.msra.mxu0 %v101
    %911 = vmatprep.subr.mxu0 %v105
    %912 = vmatpush1.msra.mxu0 %v104
    %913 = vmatprep.subr.mxu0 %v108
    %914 = vmatpush1.msra.mxu0 %v107
    %915 = vmatprep.subr.mxu0 0.0
    %916 = vmatpush1.msra.mxu0 0.0
    %917 = vmatprep.subr.mxu0 0.0
    %918 = vmatpush1.msra.mxu0 0.0
    %919 = vmatprep.subr.mxu0 0.0
    %920 = vmatpush1.msra.mxu0 0.0
    %921 = vmatprep.subr.mxu0 0.0
    %922 = vmatpush1.msra.mxu0 0.0
    %923 = vmatprep.subr.mxu0 0.0
    %924 = vmatpush1.msra.mxu0 0.0
    %925 = vmatprep.subr.mxu0 0.0
    %926 = vmatpush1.msra.mxu0 0.0
    %927 = vmatprep.subr.mxu0 0.0
    %928 = vmatpush1.msra.mxu0 0.0
    %929 = vmatprep.subr.mxu0 0.0
    %930 = vmatpush1.msra.mxu0 0.0
    %931 = vmatprep.subr.mxu0 0.0
    %932 = vmatpush1.msra.mxu0 0.0
    %933 = vmatprep.subr.mxu0 0.0
    %934 = vmatpush1.msra.mxu0 0.0
    %935 = vmatprep.subr.mxu0 0.0
    %936 = vmatpush1.msra.mxu0 0.0
    %937 = vmatprep.subr.mxu0 0.0
    %938 = vmatpush1.msra.mxu0 0.0
    %939 = vmatprep.subr.mxu0 0.0
    %940 = vmatpush1.msra.mxu0 0.0
    %941 = vmatprep.subr.mxu0 0.0
    %942 = vmatpush1.msra.mxu0 0.0
    %943 = vmatprep.subr.mxu0 0.0
    %944 = vmatpush1.msra.mxu0 0.0
    %945 = vmatprep.subr.mxu0 0.0
    %946 = vmatpush1.msra.mxu0 0.0
    %947 = vmatprep.mubr.f32.mxu0 0.0
    %948 = vmatmul.mubr.f32.gmra.mrb[0].mxu0 %v882
    %v949 = vpop.f32.mrb[0].mxu0
    %v950 = vadd.f32 0.0, %v949
    %v951 = vpop.f32.mrb[0].mxu0
    %v952 = vadd.f32 0.0, %v951
    %953 = vdwg.mxu0
    %954 = vmatprep.subr.mxu0 0.0
    %955 = vmatpush1.msra.mxu0 %v64
    %956 = vmatprep.subr.mxu0 0.0
    %957 = vmatpush1.msra.mxu0 %v67
    %958 = vmatprep.subr.mxu0 0.0
    %959 = vmatpush1.msra.mxu0 %v70
    %960 = vmatprep.subr.mxu0 0.0
    %961 = vmatpush1.msra.mxu0 %v73
    %962 = vmatprep.subr.mxu0 0.0
    %963 = vmatpush1.msra.mxu0 %v76
    %964 = vmatprep.subr.mxu0 0.0
    %965 = vmatpush1.msra.mxu0 %v79
    %966 = vmatprep.subr.mxu0 0.0
    %967 = vmatpush1.msra.mxu0 %v82
    %968 = vmatprep.subr.mxu0 0.0
    %969 = vmatpush1.msra.mxu0 %v85
    %970 = vmatprep.subr.mxu0 0.0
    %971 = vmatpush1.msra.mxu0 %v88
    %972 = vmatprep.subr.mxu0 0.0
    %973 = vmatpush1.msra.mxu0 %v91
    %974 = vmatprep.subr.mxu0 0.0
    %975 = vmatpush1.msra.mxu0 %v94
    %976 = vmatprep.subr.mxu0 0.0
    %977 = vmatpush1.msra.mxu0 %v97
    %978 = vmatprep.subr.mxu0 0.0
    %979 = vmatpush1.msra.mxu0 %v100
    %980 = vmatprep.subr.mxu0 0.0
    %981 = vmatpush1.msra.mxu0 %v103
    %982 = vmatprep.subr.mxu0 0.0
    %983 = vmatpush1.msra.mxu0 %v106
    %984 = vmatprep.subr.mxu0 0.0
    %985 = vmatpush1.msra.mxu0 %v109
    %986 = vmatprep.subr.mxu0 0.0
    %987 = vmatpush1.msra.mxu0 0.0
    %988 = vmatprep.subr.mxu0 0.0
    %989 = vmatpush1.msra.mxu0 0.0
    %990 = vmatprep.subr.mxu0 0.0
    %991 = vmatpush1.msra.mxu0 0.0
    %992 = vmatprep.subr.mxu0 0.0
    %993 = vmatpush1.msra.mxu0 0.0
    %994 = vmatprep.subr.mxu0 0.0
    %995 = vmatpush1.msra.mxu0 0.0
    %996 = vmatprep.subr.mxu0 0.0
    %997 = vmatpush1.msra.mxu0 0.0
    %998 = vmatprep.subr.mxu0 0.0
    %999 = vmatpush1.msra.mxu0 0.0
    %1000 = vmatprep.subr.mxu0 0.0
    %1001 = vmatpush1.msra.mxu0 0.0
    %1002 = vmatprep.subr.mxu0 0.0
    %1003 = vmatpush1.msra.mxu0 0.0
    %1004 = vmatprep.subr.mxu0 0.0
    %1005 = vmatpush1.msra.mxu0 0.0
    %1006 = vmatprep.subr.mxu0 0.0
    %1007 = vmatpush1.msra.mxu0 0.0
    %1008 = vmatprep.subr.mxu0 0.0
    %1009 = vmatpush1.msra.mxu0 0.0
    %1010 = vmatprep.subr.mxu0 0.0
    %1011 = vmatpush1.msra.mxu0 0.0
    %1012 = vmatprep.subr.mxu0 0.0
    %1013 = vmatpush1.msra.mxu0 0.0
    %1014 = vmatprep.subr.mxu0 0.0
    %1015 = vmatpush1.msra.mxu0 0.0
    %1016 = vmatprep.subr.mxu0 0.0
    %1017 = vmatpush1.msra.mxu0 0.0
    %1018 = vmatprep.mubr.f32.mxu0 0.0
    %1019 = vmatmul.mubr.f32.gmra.mrb[0].mxu0 %v882
    %v1020 = vpop.f32.mrb[0].mxu0
    %v1021 = vadd.f32 0.0, %v1020
    %v1022 = vpop.f32.mrb[0].mxu0
    %1023 = vdwg.mxu0
    %v1024 = vadd.f32 %v228, %v950
    %v1025 = vmul.f32 %v1024, 0.5
    %v1026 = vtanh.pop %v1025
    %v1027 = vadd.f32 %v1026, 1.0
    %v1028 = vmul.f32 %v1027, 0.5
    %v1029 = vadd.f32 %v229, %v952
    %v1030 = vmul.f32 %v1029, 0.5
    %v1031 = vtanh.pop %v1030
    %v1032 = vadd.f32 %v1031, 1.0
    %v1033 = vmul.f32 %v1032, 0.5
    %v1034 = vadd.f32 %v1021, %v396
    %v1035 = vmul.f32 %v1028, %v1034
    %v1036 = vadd.f32 %v230, %v1035
    %v1037 = vtanh.pop %v1036
    %v1038 = vsub.f32 1.0, %v1033
    %v1039 = vmul.f32 %v1038, %v1037
    %v1040 = vmul.f32 %v1033, %v882
    %v1041 = vadd.f32 %v1039, %v1040
    %1042 = vmatprep.subr.mxu0 %v63
    %1043 = vmatpush1.msra.mxu0 %v62
    %1044 = vmatprep.subr.mxu0 %v66
    %1045 = vmatpush1.msra.mxu0 %v65
    %1046 = vmatprep.subr.mxu0 %v69
    %1047 = vmatpush1.msra.mxu0 %v68
    %1048 = vmatprep.subr.mxu0 %v72
    %1049 = vmatpush1.msra.mxu0 %v71
    %1050 = vmatprep.subr.mxu0 %v75
    %1051 = vmatpush1.msra.mxu0 %v74
    %1052 = vmatprep.subr.mxu0 %v78
    %1053 = vmatpush1.msra.mxu0 %v77
    %1054 = vmatprep.subr.mxu0 %v81
    %1055 = vmatpush1.msra.mxu0 %v80
    %1056 = vmatprep.subr.mxu0 %v84
    %1057 = vmatpush1.msra.mxu0 %v83
    %1058 = vmatprep.subr.mxu0 %v87
    %1059 = vmatpush1.msra.mxu0 %v86
    %1060 = vmatprep.subr.mxu0 %v90
    %1061 = vmatpush1.msra.mxu0 %v89
    %1062 = vmatprep.subr.mxu0 %v93
    %1063 = vmatpush1.msra.mxu0 %v92
    %1064 = vmatprep.subr.mxu0 %v96
    %1065 = vmatpush1.msra.mxu0 %v95
    %1066 = vmatprep.subr.mxu0 %v99
    %1067 = vmatpush1.msra.mxu0 %v98
    %1068 = vmatprep.subr.mxu0 %v102
    %1069 = vmatpush1.msra.mxu0 %v101
    %1070 = vmatprep.subr.mxu0 %v105
    %1071 = vmatpush1.msra.mxu0 %v104
    %1072 = vmatprep.subr.mxu0 %v108
    %1073 = vmatpush1.msra.mxu0 %v107
    %1074 = vmatprep.subr.mxu0 0.0
    %1075 = vmatpush1.msra.mxu0 0.0
    %1076 = vmatprep.subr.mxu0 0.0
    %1077 = vmatpush1.msra.mxu0 0.0
    %1078 = vmatprep.subr.mxu0 0.0
    %1079 = vmatpush1.msra.mxu0 0.0
    %1080 = vmatprep.subr.mxu0 0.0
    %1081 = vmatpush1.msra.mxu0 0.0
    %1082 = vmatprep.subr.mxu0 0.0
    %1083 = vmatpush1.msra.mxu0 0.0
    %1084 = vmatprep.subr.mxu0 0.0
    %1085 = vmatpush1.msra.mxu0 0.0
    %1086 = vmatprep.subr.mxu0 0.0
    %1087 = vmatpush1.msra.mxu0 0.0
    %1088 = vmatprep.subr.mxu0 0.0
    %1089 = vmatpush1.msra.mxu0 0.0
    %1090 = vmatprep.subr.mxu0 0.0
    %1091 = vmatpush1.msra.mxu0 0.0
    %1092 = vmatprep.subr.mxu0 0.0
    %1093 = vmatpush1.msra.mxu0 0.0
    %1094 = vmatprep.subr.mxu0 0.0
    %1095 = vmatpush1.msra.mxu0 0.0
    %1096 = vmatprep.subr.mxu0 0.0
    %1097 = vmatpush1.msra.mxu0 0.0
    %1098 = vmatprep.subr.mxu0 0.0
    %1099 = vmatpush1.msra.mxu0 0.0
    %1100 = vmatprep.subr.mxu0 0.0
    %1101 = vmatpush1.msra.mxu0 0.0
    %1102 = vmatprep.subr.mxu0 0.0
    %1103 = vmatpush1.msra.mxu0 0.0
    %1104 = vmatprep.subr.mxu0 0.0
    %1105 = vmatpush1.msra.mxu0 0.0
    %1106 = vmatprep.mubr.f32.mxu0 0.0
    %1107 = vmatmul.mubr.f32.gmra.mrb[0].mxu0 %v1041
    %v1108 = vpop.f32.mrb[0].mxu0
    %v1109 = vadd.f32 0.0, %v1108
    %v1110 = vpop.f32.mrb[0].mxu0
    %v1111 = vadd.f32 0.0, %v1110
    %1112 = vdwg.mxu0
    %1113 = vmatprep.subr.mxu0 0.0
    %1114 = vmatpush1.msra.mxu0 %v64
    %1115 = vmatprep.subr.mxu0 0.0
    %1116 = vmatpush1.msra.mxu0 %v67
    %1117 = vmatprep.subr.mxu0 0.0
    %1118 = vmatpush1.msra.mxu0 %v70
    %1119 = vmatprep.subr.mxu0 0.0
    %1120 = vmatpush1.msra.mxu0 %v73
    %1121 = vmatprep.subr.mxu0 0.0
    %1122 = vmatpush1.msra.mxu0 %v76
    %1123 = vmatprep.subr.mxu0 0.0
    %1124 = vmatpush1.msra.mxu0 %v79
    %1125 = vmatprep.subr.mxu0 0.0
    %1126 = vmatpush1.msra.mxu0 %v82
    %1127 = vmatprep.subr.mxu0 0.0
    %1128 = vmatpush1.msra.mxu0 %v85
    %1129 = vmatprep.subr.mxu0 0.0
    %1130 = vmatpush1.msra.mxu0 %v88
    %1131 = vmatprep.subr.mxu0 0.0
    %1132 = vmatpush1.msra.mxu0 %v91
    %1133 = vmatprep.subr.mxu0 0.0
    %1134 = vmatpush1.msra.mxu0 %v94
    %1135 = vmatprep.subr.mxu0 0.0
    %1136 = vmatpush1.msra.mxu0 %v97
    %1137 = vmatprep.subr.mxu0 0.0
    %1138 = vmatpush1.msra.mxu0 %v100
    %1139 = vmatprep.subr.mxu0 0.0
    %1140 = vmatpush1.msra.mxu0 %v103
    %1141 = vmatprep.subr.mxu0 0.0
    %1142 = vmatpush1.msra.mxu0 %v106
    %1143 = vmatprep.subr.mxu0 0.0
    %1144 = vmatpush1.msra.mxu0 %v109
    %1145 = vmatprep.subr.mxu0 0.0
    %1146 = vmatpush1.msra.mxu0 0.0
    %1147 = vmatprep.subr.mxu0 0.0
    %1148 = vmatpush1.msra.mxu0 0.0
    %1149 = vmatprep.subr.mxu0 0.0
    %1150 = vmatpush1.msra.mxu0 0.0
    %1151 = vmatprep.subr.mxu0 0.0
    %1152 = vmatpush1.msra.mxu0 0.0
    %1153 = vmatprep.subr.mxu0 0.0
    %1154 = vmatpush1.msra.mxu0 0.0
    %1155 = vmatprep.subr.mxu0 0.0
    %1156 = vmatpush1.msra.mxu0 0.0
    %1157 = vmatprep.subr.mxu0 0.0
    %1158 = vmatpush1.msra.mxu0 0.0
    %1159 = vmatprep.subr.mxu0 0.0
    %1160 = vmatpush1.msra.mxu0 0.0
    %1161 = vmatprep.subr.mxu0 0.0
    %1162 = vmatpush1.msra.mxu0 0.0
    %1163 = vmatprep.subr.mxu0 0.0
    %1164 = vmatpush1.msra.mxu0 0.0
    %1165 = vmatprep.subr.mxu0 0.0
    %1166 = vmatpush1.msra.mxu0 0.0
    %1167 = vmatprep.subr.mxu0 0.0
    %1168 = vmatpush1.msra.mxu0 0.0
    %1169 = vmatprep.subr.mxu0 0.0
    %1170 = vmatpush1.msra.mxu0 0.0
    %1171 = vmatprep.subr.mxu0 0.0
    %1172 = vmatpush1.msra.mxu0 0.0
    %1173 = vmatprep.subr.mxu0 0.0
    %1174 = vmatpush1.msra.mxu0 0.0
    %1175 = vmatprep.subr.mxu0 0.0
    %1176 = vmatpush1.msra.mxu0 0.0
    %1177 = vmatprep.mubr.f32.mxu0 0.0
    %1178 = vmatmul.mubr.f32.gmra.mrb[0].mxu0 %v1041
    %v1179 = vpop.f32.mrb[0].mxu0
    %v1180 = vadd.f32 0.0, %v1179
    %v1181 = vpop.f32.mrb[0].mxu0
    %1182 = vdwg.mxu0
    %v1183 = vadd.f32 %v231, %v1109
    %v1184 = vmul.f32 %v1183, 0.5
    %v1185 = vtanh.pop %v1184
    %v1186 = vadd.f32 %v1185, 1.0
    %v1187 = vmul.f32 %v1186, 0.5
    %v1188 = vadd.f32 %v232, %v1111
    %v1189 = vmul.f32 %v1188, 0.5
    %v1190 = vtanh.pop %v1189
    %v1191 = vadd.f32 %v1190, 1.0
    %v1192 = vmul.f32 %v1191, 0.5
    %v1193 = vadd.f32 %v1180, %v396
    %v1194 = vmul.f32 %v1187, %v1193
    %v1195 = vadd.f32 %v233, %v1194
    %v1196 = vtanh.pop %v1195
    %v1197 = vsub.f32 1.0, %v1192
    %v1198 = vmul.f32 %v1197, %v1196
    %v1199 = vmul.f32 %v1192, %v1041
    %v1200 = vadd.f32 %v1198, %v1199
    %1201 = vmatprep.subr.mxu0 %v63
    %1202 = vmatpush1.msra.mxu0 %v62
    %1203 = vmatprep.subr.mxu0 %v66
    %1204 = vmatpush1.msra.mxu0 %v65
    %1205 = vmatprep.subr.mxu0 %v69
    %1206 = vmatpush1.msra.mxu0 %v68
    %1207 = vmatprep.subr.mxu0 %v72
    %1208 = vmatpush1.msra.mxu0 %v71
    %1209 = vmatprep.subr.mxu0 %v75
    %1210 = vmatpush1.msra.mxu0 %v74
    %1211 = vmatprep.subr.mxu0 %v78
    %1212 = vmatpush1.msra.mxu0 %v77
    %1213 = vmatprep.subr.mxu0 %v81
    %1214 = vmatpush1.msra.mxu0 %v80
    %1215 = vmatprep.subr.mxu0 %v84
    %1216 = vmatpush1.msra.mxu0 %v83
    %1217 = vmatprep.subr.mxu0 %v87
    %1218 = vmatpush1.msra.mxu0 %v86
    %1219 = vmatprep.subr.mxu0 %v90
    %1220 = vmatpush1.msra.mxu0 %v89
    %1221 = vmatprep.subr.mxu0 %v93
    %1222 = vmatpush1.msra.mxu0 %v92
    %1223 = vmatprep.subr.mxu0 %v96
    %1224 = vmatpush1.msra.mxu0 %v95
    %1225 = vmatprep.subr.mxu0 %v99
    %1226 = vmatpush1.msra.mxu0 %v98
    %1227 = vmatprep.subr.mxu0 %v102
    %1228 = vmatpush1.msra.mxu0 %v101
    %1229 = vmatprep.subr.mxu0 %v105
    %1230 = vmatpush1.msra.mxu0 %v104
    %1231 = vmatprep.subr.mxu0 %v108
    %1232 = vmatpush1.msra.mxu0 %v107
    %1233 = vmatprep.subr.mxu0 0.0
    %1234 = vmatpush1.msra.mxu0 0.0
    %1235 = vmatprep.subr.mxu0 0.0
    %1236 = vmatpush1.msra.mxu0 0.0
    %1237 = vmatprep.subr.mxu0 0.0
    %1238 = vmatpush1.msra.mxu0 0.0
    %1239 = vmatprep.subr.mxu0 0.0
    %1240 = vmatpush1.msra.mxu0 0.0
    %1241 = vmatprep.subr.mxu0 0.0
    %1242 = vmatpush1.msra.mxu0 0.0
    %1243 = vmatprep.subr.mxu0 0.0
    %1244 = vmatpush1.msra.mxu0 0.0
    %1245 = vmatprep.subr.mxu0 0.0
    %1246 = vmatpush1.msra.mxu0 0.0
    %1247 = vmatprep.subr.mxu0 0.0
    %1248 = vmatpush1.msra.mxu0 0.0
    %1249 = vmatprep.subr.mxu0 0.0
    %1250 = vmatpush1.msra.mxu0 0.0
    %1251 = vmatprep.subr.mxu0 0.0
    %1252 = vmatpush1.msra.mxu0 0.0
    %1253 = vmatprep.subr.mxu0 0.0
    %1254 = vmatpush1.msra.mxu0 0.0
    %1255 = vmatprep.subr.mxu0 0.0
    %1256 = vmatpush1.msra.mxu0 0.0
    %1257 = vmatprep.subr.mxu0 0.0
    %1258 = vmatpush1.msra.mxu0 0.0
    %1259 = vmatprep.subr.mxu0 0.0
    %1260 = vmatpush1.msra.mxu0 0.0
    %1261 = vmatprep.subr.mxu0 0.0
    %1262 = vmatpush1.msra.mxu0 0.0
    %1263 = vmatprep.subr.mxu0 0.0
    %1264 = vmatpush1.msra.mxu0 0.0
    %1265 = vmatprep.mubr.f32.mxu0 0.0
    %1266 = vmatmul.mubr.f32.gmra.mrb[0].mxu0 %v1200
    %v1267 = vpop.f32.mrb[0].mxu0
    %v1268 = vadd.f32 0.0, %v1267
    %v1269 = vpop.f32.mrb[0].mxu0
    %v1270 = vadd.f32 0.0, %v1269
    %1271 = vdwg.mxu0
    %1272 = vmatprep.subr.mxu0 0.0
    %1273 = vmatpush1.msra.mxu0 %v64
    %1274 = vmatprep.subr.mxu0 0.0
    %1275 = vmatpush1.msra.mxu0 %v67
    %1276 = vmatprep.subr.mxu0 0.0
    %1277 = vmatpush1.msra.mxu0 %v70
    %1278 = vmatprep.subr.mxu0 0.0
    %1279 = vmatpush1.msra.mxu0 %v73
    %1280 = vmatprep.subr.mxu0 0.0
    %1281 = vmatpush1.msra.mxu0 %v76
    %1282 = vmatprep.subr.mxu0 0.0
    %1283 = vmatpush1.msra.mxu0 %v79
    %1284 = vmatprep.subr.mxu0 0.0
    %1285 = vmatpush1.msra.mxu0 %v82
    %1286 = vmatprep.subr.mxu0 0.0
    %1287 = vmatpush1.msra.mxu0 %v85
    %1288 = vmatprep.subr.mxu0 0.0
    %1289 = vmatpush1.msra.mxu0 %v88
    %1290 = vmatprep.subr.mxu0 0.0
    %1291 = vmatpush1.msra.mxu0 %v91
    %1292 = vmatprep.subr.mxu0 0.0
    %1293 = vmatpush1.msra.mxu0 %v94
    %1294 = vmatprep.subr.mxu0 0.0
    %1295 = vmatpush1.msra.mxu0 %v97
    %1296 = vmatprep.subr.mxu0 0.0
    %1297 = vmatpush1.msra.mxu0 %v100
    %1298 = vmatprep.subr.mxu0 0.0
    %1299 = vmatpush1.msra.mxu0 %v103
    %1300 = vmatprep.subr.mxu0 0.0
    %1301 = vmatpush1.msra.mxu0 %v106
    %1302 = vmatprep.subr.mxu0 0.0
    %1303 = vmatpush1.msra.mxu0 %v109
    %1304 = vmatprep.subr.mxu0 0.0
    %1305 = vmatpush1.msra.mxu0 0.0
    %1306 = vmatprep.subr.mxu0 0.0
    %1307 = vmatpush1.msra.mxu0 0.0
    %1308 = vmatprep.subr.mxu0 0.0
    %1309 = vmatpush1.msra.mxu0 0.0
    %1310 = vmatprep.subr.mxu0 0.0
    %1311 = vmatpush1.msra.mxu0 0.0
    %1312 = vmatprep.subr.mxu0 0.0
    %1313 = vmatpush1.msra.mxu0 0.0
    %1314 = vmatprep.subr.mxu0 0.0
    %1315 = vmatpush1.msra.mxu0 0.0
    %1316 = vmatprep.subr.mxu0 0.0
    %1317 = vmatpush1.msra.mxu0 0.0
    %1318 = vmatprep.subr.mxu0 0.0
    %1319 = vmatpush1.msra.mxu0 0.0
    %1320 = vmatprep.subr.mxu0 0.0
    %1321 = vmatpush1.msra.mxu0 0.0
    %1322 = vmatprep.subr.mxu0 0.0
    %1323 = vmatpush1.msra.mxu0 0.0
    %1324 = vmatprep.subr.mxu0 0.0
    %1325 = vmatpush1.msra.mxu0 0.0
    %1326 = vmatprep.subr.mxu0 0.0
    %1327 = vmatpush1.msra.mxu0 0.0
    %1328 = vmatprep.subr.mxu0 0.0
    %1329 = vmatpush1.msra.mxu0 0.0
    %1330 = vmatprep.subr.mxu0 0.0
    %1331 = vmatpush1.msra.mxu0 0.0
    %1332 = vmatprep.subr.mxu0 0.0
    %1333 = vmatpush1.msra.mxu0 0.0
    %1334 = vmatprep.subr.mxu0 0.0
    %1335 = vmatpush1.msra.mxu0 0.0
    %1336 = vmatprep.mubr.f32.mxu0 0.0
    %1337 = vmatmul.mubr.f32.gmra.mrb[0].mxu0 %v1200
    %v1338 = vpop.f32.mrb[0].mxu0
    %v1339 = vadd.f32 0.0, %v1338
    %v1340 = vpop.f32.mrb[0].mxu0
    %1341 = vdwg.mxu0
    %v1342 = vadd.f32 %v234, %v1268
    %v1343 = vmul.f32 %v1342, 0.5
    %v1344 = vtanh.pop %v1343
    %v1345 = vadd.f32 %v1344, 1.0
    %v1346 = vmul.f32 %v1345, 0.5
    %v1347 = vadd.f32 %v235, %v1270
    %v1348 = vmul.f32 %v1347, 0.5
    %v1349 = vtanh.pop %v1348
    %v1350 = vadd.f32 %v1349, 1.0
    %v1351 = vmul.f32 %v1350, 0.5
    %v1352 = vadd.f32 %v1339, %v396
    %v1353 = vmul.f32 %v1346, %v1352
    %v1354 = vadd.f32 %v236, %v1353
    %v1355 = vtanh.pop %v1354
    %v1356 = vsub.f32 1.0, %v1351
    %v1357 = vmul.f32 %v1356, %v1355
    %v1358 = vmul.f32 %v1351, %v1200
    %v1359 = vadd.f32 %v1357, %v1358
    %1360 = vmatprep.subr.mxu0 %v63
    %1361 = vmatpush1.msra.mxu0 %v62
    %1362 = vmatprep.subr.mxu0 %v66
    %1363 = vmatpush1.msra.mxu0 %v65
    %1364 = vmatprep.subr.mxu0 %v69
    %1365 = vmatpush1.msra.mxu0 %v68
    %1366 = vmatprep.subr.mxu0 %v72
    %1367 = vmatpush1.msra.mxu0 %v71
    %1368 = vmatprep.subr.mxu0 %v75
    %1369 = vmatpush1.msra.mxu0 %v74
    %1370 = vmatprep.subr.mxu0 %v78
    %1371 = vmatpush1.msra.mxu0 %v77
    %1372 = vmatprep.subr.mxu0 %v81
    %1373 = vmatpush1.msra.mxu0 %v80
    %1374 = vmatprep.subr.mxu0 %v84
    %1375 = vmatpush1.msra.mxu0 %v83
    %1376 = vmatprep.subr.mxu0 %v87
    %1377 = vmatpush1.msra.mxu0 %v86
    %1378 = vmatprep.subr.mxu0 %v90
    %1379 = vmatpush1.msra.mxu0 %v89
    %1380 = vmatprep.subr.mxu0 %v93
    %1381 = vmatpush1.msra.mxu0 %v92
    %1382 = vmatprep.subr.mxu0 %v96
    %1383 = vmatpush1.msra.mxu0 %v95
    %1384 = vmatprep.subr.mxu0 %v99
    %1385 = vmatpush1.msra.mxu0 %v98
    %1386 = vmatprep.subr.mxu0 %v102
    %1387 = vmatpush1.msra.mxu0 %v101
    %1388 = vmatprep.subr.mxu0 %v105
    %1389 = vmatpush1.msra.mxu0 %v104
    %1390 = vmatprep.subr.mxu0 %v108
    %1391 = vmatpush1.msra.mxu0 %v107
    %1392 = vmatprep.subr.mxu0 0.0
    %1393 = vmatpush1.msra.mxu0 0.0
    %1394 = vmatprep.subr.mxu0 0.0
    %1395 = vmatpush1.msra.mxu0 0.0
    %1396 = vmatprep.subr.mxu0 0.0
    %1397 = vmatpush1.msra.mxu0 0.0
    %1398 = vmatprep.subr.mxu0 0.0
    %1399 = vmatpush1.msra.mxu0 0.0
    %1400 = vmatprep.subr.mxu0 0.0
    %1401 = vmatpush1.msra.mxu0 0.0
    %1402 = vmatprep.subr.mxu0 0.0
    %1403 = vmatpush1.msra.mxu0 0.0
    %1404 = vmatprep.subr.mxu0 0.0
    %1405 = vmatpush1.msra.mxu0 0.0
    %1406 = vmatprep.subr.mxu0 0.0
    %1407 = vmatpush1.msra.mxu0 0.0
    %1408 = vmatprep.subr.mxu0 0.0
    %1409 = vmatpush1.msra.mxu0 0.0
    %1410 = vmatprep.subr.mxu0 0.0
    %1411 = vmatpush1.msra.mxu0 0.0
    %1412 = vmatprep.subr.mxu0 0.0
    %1413 = vmatpush1.msra.mxu0 0.0
    %1414 = vmatprep.subr.mxu0 0.0
    %1415 = vmatpush1.msra.mxu0 0.0
    %1416 = vmatprep.subr.mxu0 0.0
    %1417 = vmatpush1.msra.mxu0 0.0
    %1418 = vmatprep.subr.mxu0 0.0
    %1419 = vmatpush1.msra.mxu0 0.0
    %1420 = vmatprep.subr.mxu0 0.0
    %1421 = vmatpush1.msra.mxu0 0.0
    %1422 = vmatprep.subr.mxu0 0.0
    %1423 = vmatpush1.msra.mxu0 0.0
    %1424 = vmatprep.mubr.f32.mxu0 0.0
    %1425 = vmatmul.mubr.f32.gmra.mrb[0].mxu0 %v1359
    %v1426 = vpop.f32.mrb[0].mxu0
    %v1427 = vadd.f32 0.0, %v1426
    %v1428 = vpop.f32.mrb[0].mxu0
    %v1429 = vadd.f32 0.0, %v1428
    %1430 = vdwg.mxu0
    %1431 = vmatprep.subr.mxu0 0.0
    %1432 = vmatpush1.msra.mxu0 %v64
    %1433 = vmatprep.subr.mxu0 0.0
    %1434 = vmatpush1.msra.mxu0 %v67
    %1435 = vmatprep.subr.mxu0 0.0
    %1436 = vmatpush1.msra.mxu0 %v70
    %1437 = vmatprep.subr.mxu0 0.0
    %1438 = vmatpush1.msra.mxu0 %v73
    %1439 = vmatprep.subr.mxu0 0.0
    %1440 = vmatpush1.msra.mxu0 %v76
    %1441 = vmatprep.subr.mxu0 0.0
    %1442 = vmatpush1.msra.mxu0 %v79
    %1443 = vmatprep.subr.mxu0 0.0
    %1444 = vmatpush1.msra.mxu0 %v82
    %1445 = vmatprep.subr.mxu0 0.0
    %1446 = vmatpush1.msra.mxu0 %v85
    %1447 = vmatprep.subr.mxu0 0.0
    %1448 = vmatpush1.msra.mxu0 %v88
    %1449 = vmatprep.subr.mxu0 0.0
    %1450 = vmatpush1.msra.mxu0 %v91
    %1451 = vmatprep.subr.mxu0 0.0
    %1452 = vmatpush1.msra.mxu0 %v94
    %1453 = vmatprep.subr.mxu0 0.0
    %1454 = vmatpush1.msra.mxu0 %v97
    %1455 = vmatprep.subr.mxu0 0.0
    %1456 = vmatpush1.msra.mxu0 %v100
    %1457 = vmatprep.subr.mxu0 0.0
    %1458 = vmatpush1.msra.mxu0 %v103
    %1459 = vmatprep.subr.mxu0 0.0
    %1460 = vmatpush1.msra.mxu0 %v106
    %1461 = vmatprep.subr.mxu0 0.0
    %1462 = vmatpush1.msra.mxu0 %v109
    %1463 = vmatprep.subr.mxu0 0.0
    %1464 = vmatpush1.msra.mxu0 0.0
    %1465 = vmatprep.subr.mxu0 0.0
    %1466 = vmatpush1.msra.mxu0 0.0
    %1467 = vmatprep.subr.mxu0 0.0
    %1468 = vmatpush1.msra.mxu0 0.0
    %1469 = vmatprep.subr.mxu0 0.0
    %1470 = vmatpush1.msra.mxu0 0.0
    %1471 = vmatprep.subr.mxu0 0.0
    %1472 = vmatpush1.msra.mxu0 0.0
    %1473 = vmatprep.subr.mxu0 0.0
    %1474 = vmatpush1.msra.mxu0 0.0
    %1475 = vmatprep.subr.mxu0 0.0
    %1476 = vmatpush1.msra.mxu0 0.0
    %1477 = vmatprep.subr.mxu0 0.0
    %1478 = vmatpush1.msra.mxu0 0.0
    %1479 = vmatprep.subr.mxu0 0.0
    %1480 = vmatpush1.msra.mxu0 0.0
    %1481 = vmatprep.subr.mxu0 0.0
    %1482 = vmatpush1.msra.mxu0 0.0
    %1483 = vmatprep.subr.mxu0 0.0
    %1484 = vmatpush1.msra.mxu0 0.0
    %1485 = vmatprep.subr.mxu0 0.0
    %1486 = vmatpush1.msra.mxu0 0.0
    %1487 = vmatprep.subr.mxu0 0.0
    %1488 = vmatpush1.msra.mxu0 0.0
    %1489 = vmatprep.subr.mxu0 0.0
    %1490 = vmatpush1.msra.mxu0 0.0
    %1491 = vmatprep.subr.mxu0 0.0
    %1492 = vmatpush1.msra.mxu0 0.0
    %1493 = vmatprep.subr.mxu0 0.0
    %1494 = vmatpush1.msra.mxu0 0.0
    %1495 = vmatprep.mubr.f32.mxu0 0.0
    %1496 = vmatmul.mubr.f32.gmra.mrb[0].mxu0 %v1359
    %v1497 = vpop.f32.mrb[0].mxu0
    %v1498 = vadd.f32 0.0, %v1497
    %v1499 = vpop.f32.mrb[0].mxu0
    %1500 = vdwg.mxu0
    %v1501 = vadd.f32 %v237, %v1427
    %v1502 = vmul.f32 %v1501, 0.5
    %v1503 = vtanh.pop %v1502
    %v1504 = vadd.f32 %v1503, 1.0
    %v1505 = vmul.f32 %v1504, 0.5
    %v1506 = vadd.f32 %v238, %v1429
    %v1507 = vmul.f32 %v1506, 0.5
    %v1508 = vtanh.pop %v1507
    %v1509 = vadd.f32 %v1508, 1.0
    %v1510 = vmul.f32 %v1509, 0.5
    %v1511 = vadd.f32 %v1498, %v396
    %v1512 = vmul.f32 %v1505, %v1511
    %v1513 = vadd.f32 %v239, %v1512
    %v1514 = vtanh.pop %v1513
    %v1515 = vsub.f32 1.0, %v1510
    %v1516 = vmul.f32 %v1515, %v1514
    %v1517 = vmul.f32 %v1510, %v1359
    %v1518 = vadd.f32 %v1516, %v1517
    %1519 = vst [vmem:[#allocation8] sm:$0xff] %v1518
    %v1520 = vld [vmem:[#allocation5] sm:$0xff]
    %v1521 = vld [vmem:[#allocation5 + $0x8] sm:$0xff]
    %v1522 = vld [vmem:[#allocation5 + $0x10] sm:$0xff]
    %v1523 = vld [vmem:[#allocation5 + $0x18] sm:$0xff]
    %v1524 = vld [vmem:[#allocation5 + $0x20] sm:$0xff]
    %v1525 = vld [vmem:[#allocation5 + $0x28] sm:$0xff]
    %v1526 = vld [vmem:[#allocation5 + $0x30] sm:$0xff]
    %v1527 = vld [vmem:[#allocation5 + $0x38] sm:$0xff]
    %v1528 = vld [vmem:[#allocation5 + $0x40] sm:$0xff]
    %v1529 = vld [vmem:[#allocation5 + $0x48] sm:$0xff]
    %v1530 = vld [vmem:[#allocation5 + $0x50] sm:$0xff]
    %v1531 = vld [vmem:[#allocation5 + $0x58] sm:$0xff]
    %v1532 = vld [vmem:[#allocation5 + $0x60] sm:$0xff]
    %v1533 = vld [vmem:[#allocation5 + $0x68] sm:$0xff]
    %v1534 = vld [vmem:[#allocation5 + $0x70] sm:$0xff]
    %v1535 = vld [vmem:[#allocation5 + $0x78] sm:$0xff]
    %v1536 = vld [vmem:[%s7] sm:$0x1]
    %v1538 = vlaneseq
    %v1539 = vshrl.u32 %v1538, 7
    %v1540 = vsub.s32 0, %v1539
    %v1541 = vrot.slane %v1536, %v1540
    %1543 = vmatprep.subr.mxu0 0.0
    %1544 = vmatpush1.msra.mxu0 %v1520
    %1545 = vmatprep.subr.mxu0 0.0
    %1546 = vmatpush1.msra.mxu0 %v1521
    %1547 = vmatprep.subr.mxu0 0.0
    %1548 = vmatpush1.msra.mxu0 %v1522
    %1549 = vmatprep.subr.mxu0 0.0
    %1550 = vmatpush1.msra.mxu0 %v1523
    %1551 = vmatprep.subr.mxu0 0.0
    %1552 = vmatpush1.msra.mxu0 %v1524
    %1553 = vmatprep.subr.mxu0 0.0
    %1554 = vmatpush1.msra.mxu0 %v1525
    %1555 = vmatprep.subr.mxu0 0.0
    %1556 = vmatpush1.msra.mxu0 %v1526
    %1557 = vmatprep.subr.mxu0 0.0
    %1558 = vmatpush1.msra.mxu0 %v1527
    %1559 = vmatprep.subr.mxu0 0.0
    %1560 = vmatpush1.msra.mxu0 %v1528
    %1561 = vmatprep.subr.mxu0 0.0
    %1562 = vmatpush1.msra.mxu0 %v1529
    %1563 = vmatprep.subr.mxu0 0.0
    %1564 = vmatpush1.msra.mxu0 %v1530
    %1565 = vmatprep.subr.mxu0 0.0
    %1566 = vmatpush1.msra.mxu0 %v1531
    %1567 = vmatprep.subr.mxu0 0.0
    %1568 = vmatpush1.msra.mxu0 %v1532
    %1569 = vmatprep.subr.mxu0 0.0
    %1570 = vmatpush1.msra.mxu0 %v1533
    %1571 = vmatprep.subr.mxu0 0.0
    %1572 = vmatpush1.msra.mxu0 %v1534
    %1573 = vmatprep.subr.mxu0 0.0
    %1574 = vmatpush1.msra.mxu0 %v1535
    %1575 = vmatprep.subr.mxu0 0.0
    %1576 = vmatpush1.msra.mxu0 0.0
    %1577 = vmatprep.subr.mxu0 0.0
    %1578 = vmatpush1.msra.mxu0 0.0
    %1579 = vmatprep.subr.mxu0 0.0
    %1580 = vmatpush1.msra.mxu0 0.0
    %1581 = vmatprep.subr.mxu0 0.0
    %1582 = vmatpush1.msra.mxu0 0.0
    %1583 = vmatprep.subr.mxu0 0.0
    %1584 = vmatpush1.msra.mxu0 0.0
    %1585 = vmatprep.subr.mxu0 0.0
    %1586 = vmatpush1.msra.mxu0 0.0
    %1587 = vmatprep.subr.mxu0 0.0
    %1588 = vmatpush1.msra.mxu0 0.0
    %1589 = vmatprep.subr.mxu0 0.0
    %1590 = vmatpush1.msra.mxu0 0.0
    %1591 = vmatprep.subr.mxu0 0.0
    %1592 = vmatpush1.msra.mxu0 0.0
    %1593 = vmatprep.subr.mxu0 0.0
    %1594 = vmatpush1.msra.mxu0 0.0
    %1595 = vmatprep.subr.mxu0 0.0
    %1596 = vmatpush1.msra.mxu0 0.0
    %1597 = vmatprep.subr.mxu0 0.0
    %1598 = vmatpush1.msra.mxu0 0.0
    %1599 = vmatprep.subr.mxu0 0.0
    %1600 = vmatpush1.msra.mxu0 0.0
    %1601 = vmatprep.subr.mxu0 0.0
    %1602 = vmatpush1.msra.mxu0 0.0
    %1603 = vmatprep.subr.mxu0 0.0
    %1604 = vmatpush1.msra.mxu0 0.0
    %1605 = vmatprep.subr.mxu0 0.0
    %1606 = vmatpush1.msra.mxu0 0.0
    %1607 = vmatprep.mubr.f32.mxu0 0.0
    %1608 = vmatmul.mubr.f32.gmra.mrb[0].mxu0 %v1518
    %v1609 = vpop.f32.mrb[0].mxu0
    %v1610 = vadd.f32 %v1541, %v1609
    %v1611 = vpop.f32.mrb[0].mxu0
    %1612 = vdwg.mxu0
    %1613 = vmax.xlane.f32.xlu0 %v1610
    %v1614 = vpop.xlane.xlu0 %1613
    %v1615 = vsub.f32 %v1610, %v1614
    %v1616 = vmul.f32 %v1615, 1.442695
    %v1617 = vpow.pop %v1616
    %1618 = vadd.xlane.f32.xlu0 %v1617
    %v1619 = vpop.xlane.xlu0 %1618
    %v1620 = vlog2.pop %v1619
    %v1621 = vmul.f32 %v1620, 0.6931472
    %v1622 = vsub.f32 %v1615, %v1621
    %1623 = vst [vmem:[#allocation7] sm:$0xff] %v1622
    // Predicated region
    $region42: #{tpu_custom_call.1} parent=1 // pred_check
      _
    $region43: #{tpu_custom_call.1} parent=1 // pred_check_branch
      %1625 = sbr.rel (0) target = $region45
    $region44: #{tpu_custom_call.1} parent=1 // pred_region
      %s1627 = ssub.s32 128, 128
      %1628 = vsyncadd [#allocation4], %s1627
      %s1630 = sshll.u32 [#allocation7], 4
      %s1631 = int_to_ptr.vmem [resolvable:$true] %s1630
      %1633 = dma.vmem_to_hbm [thread:$0]  %s1631, 128, %s8, [#allocation4]
    $region45: #{tpu_custom_call.1} parent=1 // pred_fallthru
      _
    // Predicated region
    $region46: #{tpu_custom_call.1} parent=1 // pred_check
      _
    $region47: #{tpu_custom_call.1} parent=1 // pred_check_branch
      %1635 = sbr.rel (0) target = $region49
    $region48: #{tpu_custom_call.1} parent=1 // pred_region
      %s1637 = ssub.s32 128, 128
      %1638 = vsyncadd [#allocation9], %s1637
      %s1640 = sshll.u32 [#allocation8], 4
      %s1641 = int_to_ptr.vmem [resolvable:$true] %s1640
      %1643 = dma.vmem_to_hbm [thread:$0]  %s1641, 128, %s9, [#allocation9]
    $region49: #{tpu_custom_call.1} parent=1 // pred_fallthru
      _
    // Predicated region
    $region50: #{tpu_custom_call.1} parent=1 // pred_check
      _
    $region51: #{tpu_custom_call.1} parent=1 // pred_check_branch
      %1645 = sbr.rel (0) target = $region53
    $region52: #{tpu_custom_call.1} parent=1 // pred_region
      %1646 = dma.done [#allocation4], 128
    $region53: #{tpu_custom_call.1} parent=1 // pred_fallthru
      _
    // Predicated region
    $region54: #{tpu_custom_call.1} parent=1 // pred_check
      _
    $region55: #{tpu_custom_call.1} parent=1 // pred_check_branch
      %1648 = sbr.rel (0) target = $region57
    $region56: #{tpu_custom_call.1} parent=1 // pred_region
      %1649 = dma.done [#allocation9], 128
    $region57: #{tpu_custom_call.1} parent=1 // pred_fallthru
      _
    %1650 = vsyncpa [#allocation3], 1
    %1651 = vsyncpa [#allocation6], 1
    %1652 = vsyncpa [#allocation4], 1
    %1653 = vsyncpa [#allocation9], 1

</llo_original>
